<compile_context>
chip_gen: v6e
topology: v6e:2x2x1
jax: 0.10.0
libtpu: 0.0.40
codegen_flags: <defaults>
</compile_context>

<pallas_src>
import functools
import math

import jax
import jax.numpy as jnp
import numpy as np
from jax import lax
from jax.experimental import pallas as pl
from jax.experimental.pallas import tpu as pltpu


def _elu(v):
    return jnp.where(v > 0, v, jnp.exp(v) - 1.0)


def _leaky_relu(v):
    return jnp.where(v > 0, v, 0.01 * v)


def _triangular_attention_kernel(
    x_ref, attr_ref, idx_c_ref, hw_ref,
    wcat_ref, bcat_ref, we_ref, be_ref,
    w1l_ref, att_ref, w2_ref, b2_ref,
    o_ref, *, update_vertex, dim_h, mm_dtype,
):
    f32 = jnp.float32

    def fdot(a, b, dims=None):
        # 2-D contraction on the MXU with f32 accumulation.
        if dims is None:
            dims = ((a.ndim - 1,), (0,))
        return lax.dot_general(a, b, (dims, ((), ())), preferred_element_type=f32)

    def mdot(a, b, dims=None):
        # Feature-path matmul: operands cast to mm_dtype (bf16 on v6e/v7x), f32 acc.
        return fdot(a.astype(mm_dtype), b.astype(mm_dtype), dims)

    x = x_ref[...]              # [N, Din] f32
    attr = attr_ref[...]        # [E, De]  f32
    idx_c = idx_c_ref[...]      # [E, 3]   int32 (hyperedge_index, column layout)
    hw = hw_ref[...]            # [E, 1]   hyperedge_weight
    n = x.shape[0]
    e = attr.shape[0]
    dh = dim_h

    # ---- one-hot membership masks (built once; update-vertex mask is reused) ----
    iota_en = lax.broadcasted_iota(jnp.int32, (e, n), 1)
    m0 = idx_c[:, 0:1] == iota_en                     # [E, N] bool
    m1 = idx_c[:, 1:2] == iota_en
    m2 = idx_c[:, 2:3] == iota_en
    mu = (m0, m1, m2)[update_vertex]                  # static select — no 4th compare
    g_all = jnp.concatenate([m0.astype(mm_dtype), m1.astype(mm_dtype),
                             m2.astype(mm_dtype)], axis=-1)       # [E, 3N]
    gu_f = mu.astype(f32)        # exact {0,1}: f32 softmax contractions
    gu_m = mu.astype(mm_dtype)   # feature gather / scatter-add operand

    # ---- fused node-space linears: y = x @ [Wi|Wj|Wk|W1r] + [bi|bj|bk|0] ----
    y = mdot(x, wcat_ref[...]) + bcat_ref[...]        # [N, 4*Dh] f32
    xi = y[:, 0 * dh:1 * dh]
    xj = y[:, 1 * dh:2 * dh]
    xk = y[:, 2 * dh:3 * dh]
    xr = y[:, 3 * dh:4 * dh]                          # x @ W1r (lin1_r, no bias)

    # ---- fused gather: one [E,3N] x [3N,Dh] MXU matmul instead of three gathers ----
    stacked = jnp.concatenate([xi, xj, xk], axis=0)   # [3N, Dh]
    xijk = _elu(mdot(g_all, stacked)
                + mdot(attr, we_ref[...]) + be_ref[...])          # [E, Dh] f32

    # ---- Edge3dConv.message ----
    # x_i @ W1r == gather(x @ W1r): reuse xr and gather with the same one-hot.
    x_ji = _leaky_relu(mdot(xijk, w1l_ref[...]) + mdot(gu_m, xr))  # [E, Dh]
    # attention logit as an MXU contraction against att [1, Dh]
    alpha = fdot(x_ji, att_ref[...], dims=((1,), (1,)))            # [E, 1]
    alpha = _leaky_relu(alpha)

    # ---- segment softmax over target nodes (torch_geometric.utils.softmax) ----
    # Only the masked max runs on the VPU/XLU; every gather-back / scatter-sum is an
    # MXU contraction of the one-hot mask (f32 for exactness).
    masked = jnp.where(mu, alpha, f32(-1e30))          # [E, N]
    seg_max = jnp.max(masked, axis=0, keepdims=True)   # [1, N]  per-node max
    max_e = fdot(gu_f, seg_max, dims=((1,), (1,)))     # gather-back       -> [E, 1]
    p = jnp.exp(alpha - max_e)                         # [E, 1]
    seg_sum = fdot(gu_f, p, dims=((0,), (0,)))         # scatter-sum       -> [N, 1]
    sum_e = fdot(gu_f, seg_sum)                        # gather-back       -> [E, 1]
    alpha = p / (sum_e + 1e-16)

    alpha = alpha * hw                                  # * edge_weight
    seg_sum2 = fdot(gu_f, alpha, dims=((0,), (0,)))     # scatter_sum(alpha) -> [N, 1]
    sum2_e = fdot(gu_f, seg_sum2)                       # sums[index]        -> [E, 1]
    alpha = alpha / (sum2_e + 1e-5)
    # TODO(synk): F.dropout omitted (module uses dropout=0.0 / eval mode => identity)

    msg = mdot(xijk, w2_ref[...]) * alpha               # [E, Dout]

    # ---- aggregate: scatter-add as a transposed MXU contraction of the same mask ----
    out = mdot(gu_m, msg, dims=((0,), (0,))) + b2_ref[...]   # [N, Dout]
    o_ref[...] = _elu(x + out)
    # TODO(synk): output stays [N, Dout] (Dout=16 lanes) to preserve the module
    #             interface; batching graphs/channels along lanes would make the
    #             writeback lane-dense.


def triangular_attention(x, hyperedge_index, hyperedge_attr, hyperedge_weight,
                         update_vertex, params, *, mm_dtype=jnp.float32):
    n, dim_in = x.shape
    e = hyperedge_index.shape[1]
    dim_h = params["W1l"].shape[0]
    dim_out = params["W2"].shape[1]

    idx_c = hyperedge_index.astype(jnp.int32).T                   # [E, 3] (glue transpose)
    hw = hyperedge_weight.astype(jnp.float32).reshape(e, 1)

    # Fuse lin_i / lin_j / lin_k / Edge3dConv.lin1_r into one [Din, 4*Dh] weight.
    wcat = jnp.concatenate([params["Wi"], params["Wj"], params["Wk"],
                            params["W1r"]], axis=1)
    bcat = jnp.concatenate([params["bi"], params["bj"], params["bk"],
                            jnp.zeros((1, dim_h), jnp.float32)], axis=1)

    inputs = [
        x.astype(jnp.float32), hyperedge_attr.astype(jnp.float32), idx_c, hw,
        wcat, bcat, params["We"], params["be"],
        params["W1l"], params["att"], params["W2"], params["b2"],
    ]

    # Scoped-VMEM sizing: operands + one-hot masks + feature temporaries, 2x margin.
    elt = 4
    mask_bytes = e * (3 * n + 2 * n) * elt
    feat_bytes = (n * 4 * dim_h + 3 * n * dim_h + e * (6 * dim_h + 2 * dim_out + 8)
                  + 4 * n) * elt
    io_bytes = sum(int(np.prod(a.shape)) * elt for a in inputs) + n * dim_out * elt
    vmem_limit = int(min(max(2 * (mask_bytes + feat_bytes + io_bytes) + (4 << 20),
                             16 << 20), 64 << 20))

    kernel = functools.partial(_triangular_attention_kernel,
                               update_vertex=int(update_vertex),
                               dim_h=int(dim_h), mm_dtype=mm_dtype)
    return pl.pallas_call(
        kernel,
        out_shape=jax.ShapeDtypeStruct((n, dim_out), jnp.float32),
        in_specs=[pl.BlockSpec(memory_space=pltpu.MemorySpace.VMEM)] * len(inputs),
        out_specs=pl.BlockSpec(memory_space=pltpu.MemorySpace.VMEM),
        compiler_params=pltpu.CompilerParams(vmem_limit_bytes=vmem_limit),
    )(*inputs)


def init_params(key, dim_in, dim_h, dim_out, dim_edge):
    ks = jax.random.split(key, 12)

    def glorot(k, shape):
        lim = math.sqrt(6.0 / (shape[0] + shape[1]))
        return jax.random.uniform(k, shape, jnp.float32, -lim, lim)

    return dict(
        Wi=glorot(ks[0], (dim_in, dim_h)),
        bi=jax.random.uniform(ks[1], (1, dim_h), jnp.float32, -0.1, 0.1),
        Wj=glorot(ks[2], (dim_in, dim_h)),
        bj=jax.random.uniform(ks[3], (1, dim_h), jnp.float32, -0.1, 0.1),
        Wk=glorot(ks[4], (dim_in, dim_h)),
        bk=jax.random.uniform(ks[5], (1, dim_h), jnp.float32, -0.1, 0.1),
        We=glorot(ks[6], (dim_edge, dim_h)),
        be=jax.random.uniform(ks[7], (1, dim_h), jnp.float32, -0.1, 0.1),
        W1l=glorot(ks[8], (dim_h, dim_h)),       # Edge3dConv.lin1_l (no bias)
        W1r=glorot(ks[9], (dim_in, dim_h)),      # Edge3dConv.lin1_r (no bias)
        att=glorot(ks[10], (1, dim_h)),          # Edge3dConv.att
        W2=glorot(ks[11], (dim_h, dim_out)),     # Edge3dConv.lin2 (no bias)
        b2=jnp.zeros((1, dim_out), jnp.float32), # Edge3dConv.bias (zeros init)
    )


def reference_forward(x, he_idx, he_attr, he_w, update_vertex, p):
    """Pure-JAX reference mirroring the PyTorch module semantics."""
    xi = (x @ p["Wi"] + p["bi"])[he_idx[0]]
    xj = (x @ p["Wj"] + p["bj"])[he_idx[1]]
    xk = (x @ p["Wk"] + p["bk"])[he_idx[2]]
    eijk = he_attr @ p["We"] + p["be"]
    xijk = _elu(xi + xj + xk + eijk)

    idx = he_idx[update_vertex]
    n = x.shape[0]
    x_i = x[idx]
    x_ji = _leaky_relu(xijk @ p["W1l"] + x_i @ p["W1r"])
    alpha = jnp.sum(x_ji * p["att"], axis=-1)
    alpha = _leaky_relu(alpha)
    seg_max = jax.ops.segment_max(alpha, idx, num_segments=n)
    pexp = jnp.exp(alpha - seg_max[idx])
    denom = jax.ops.segment_sum(pexp, idx, num_segments=n)
    alpha = pexp / (denom[idx] + 1e-16)
    alpha = alpha * he_w
    sums = jax.ops.segment_sum(alpha, idx, num_segments=n)
    alpha = alpha / (sums[idx] + 1e-5)
    msg = (xijk @ p["W2"]) * alpha[:, None]
    out = jax.ops.segment_sum(msg, idx, num_segments=n) + p["b2"]
    return _elu(x + out)


if __name__ == "__main__":
    N, E = 16, 48
    dim_in = dim_out = 16        # residual x + out requires dim_out == dim_in
    dim_h = 32
    dim_edge = 8
    update_vertex = 1

    key = jax.random.PRNGKey(0)
    kx, kidx, kattr, kw, kp = jax.random.split(key, 5)
    x = jax.random.normal(kx, (N, dim_in), jnp.float32)
    hyperedge_index = jax.random.randint(kidx, (3, E), 0, N, jnp.int32)
    hyperedge_attr = jax.random.normal(kattr, (E, dim_edge), jnp.float32)
    hyperedge_weight = jax.random.uniform(kw, (E,), jnp.float32, 0.5, 1.5)
    params = init_params(kp, dim_in, dim_h, dim_out, dim_edge)

    ref = jax.block_until_ready(
        reference_forward(x, hyperedge_index, hyperedge_attr,
                          hyperedge_weight, update_vertex, params))

    # Strict correctness check of the restructured kernel (f32 everywhere).
    out = jax.block_until_ready(
        triangular_attention(x, hyperedge_index, hyperedge_attr, hyperedge_weight,
                             update_vertex, params, mm_dtype=jnp.float32))
    np.testing.assert_allclose(np.asarray(out), np.asarray(ref), atol=1e-3, rtol=1e-3)

    # bf16 MXU operand path (recommended on v6e/v7x by the perf review): one-hots are
    # exact, feature operands lose ~3 decimal digits, so this is a coarse sanity check.
    out_bf16 = jax.block_until_ready(
        triangular_attention(x, hyperedge_index, hyperedge_attr, hyperedge_weight,
                             update_vertex, params, mm_dtype=jnp.bfloat16))
    np.testing.assert_allclose(np.asarray(out_bf16), np.asarray(ref),
                               atol=0.5, rtol=0.5)

    print("KERNEL_OK")
</pallas_src>

<mosaic_0001>
module attributes {stable_mosaic.version = 11 : i64} {
  func.func @_triangular_attention_kernel(%arg0: memref<16x16xf32, #tpu.memory_space<vmem>>, %arg1: memref<48x8xf32, #tpu.memory_space<vmem>>, %arg2: memref<48x3xi32, #tpu.memory_space<vmem>>, %arg3: memref<48x1xf32, #tpu.memory_space<vmem>>, %arg4: memref<16x128xf32, #tpu.memory_space<vmem>>, %arg5: memref<1x128xf32, #tpu.memory_space<vmem>>, %arg6: memref<8x32xf32, #tpu.memory_space<vmem>>, %arg7: memref<1x32xf32, #tpu.memory_space<vmem>>, %arg8: memref<32x32xf32, #tpu.memory_space<vmem>>, %arg9: memref<1x32xf32, #tpu.memory_space<vmem>>, %arg10: memref<32x16xf32, #tpu.memory_space<vmem>>, %arg11: memref<1x16xf32, #tpu.memory_space<vmem>>, %arg12: memref<16x16xf32, #tpu.memory_space<vmem>>) attributes {dimension_semantics = [], scalar_prefetch = 0 : i64, scratch_operands = 0 : i64, tpu.core_type = #tpu.core_type<tc>} {
    %c0 = arith.constant 0 : index
    %c0_0 = arith.constant 0 : index
    %0 = vector.load %arg0[%c0, %c0_0] : memref<16x16xf32, #tpu.memory_space<vmem>>, vector<16x16xf32>
    %c0_1 = arith.constant 0 : index
    %c0_2 = arith.constant 0 : index
    %1 = vector.load %arg1[%c0_1, %c0_2] : memref<48x8xf32, #tpu.memory_space<vmem>>, vector<48x8xf32>
    %c0_3 = arith.constant 0 : index
    %c0_4 = arith.constant 0 : index
    %2 = vector.load %arg2[%c0_3, %c0_4] : memref<48x3xi32, #tpu.memory_space<vmem>>, vector<48x3xi32>
    %c0_5 = arith.constant 0 : index
    %c0_6 = arith.constant 0 : index
    %3 = vector.load %arg3[%c0_5, %c0_6] : memref<48x1xf32, #tpu.memory_space<vmem>>, vector<48x1xf32>
    %4 = tpu.iota {dimensions = array<i32: 1>} : vector<48x16xi32>
    %5 = vector.extract_strided_slice %2 {offsets = [0, 0], sizes = [48, 1], strides = [1, 1]} : vector<48x3xi32> to vector<48x1xi32>
    %6 = vector.broadcast %5 : vector<48x1xi32> to vector<48x16xi32>
    %7 = arith.cmpi eq, %6, %4 : vector<48x16xi32>
    %8 = vector.extract_strided_slice %2 {offsets = [0, 1], sizes = [48, 1], strides = [1, 1]} : vector<48x3xi32> to vector<48x1xi32>
    %9 = vector.broadcast %8 : vector<48x1xi32> to vector<48x16xi32>
    %10 = arith.cmpi eq, %9, %4 : vector<48x16xi32>
    %11 = vector.extract_strided_slice %2 {offsets = [0, 2], sizes = [48, 1], strides = [1, 1]} : vector<48x3xi32> to vector<48x1xi32>
    %12 = vector.broadcast %11 : vector<48x1xi32> to vector<48x16xi32>
    %13 = arith.cmpi eq, %12, %4 : vector<48x16xi32>
    %14 = arith.extui %7 : vector<48x16xi1> to vector<48x16xi32>
    %15 = arith.sitofp %14 : vector<48x16xi32> to vector<48x16xf32>
    %16 = arith.extui %10 : vector<48x16xi1> to vector<48x16xi32>
    %17 = arith.sitofp %16 : vector<48x16xi32> to vector<48x16xf32>
    %18 = arith.extui %13 : vector<48x16xi1> to vector<48x16xi32>
    %19 = arith.sitofp %18 : vector<48x16xi32> to vector<48x16xf32>
    %20 = tpu.concatenate %15, %17, %19 in 1 : vector<48x16xf32>, vector<48x16xf32>, vector<48x16xf32> -> vector<48x48xf32>
    %21 = arith.extui %10 : vector<48x16xi1> to vector<48x16xi32>
    %22 = arith.sitofp %21 : vector<48x16xi32> to vector<48x16xf32>
    %23 = arith.extui %10 : vector<48x16xi1> to vector<48x16xi32>
    %24 = arith.sitofp %23 : vector<48x16xi32> to vector<48x16xf32>
    %c0_7 = arith.constant 0 : index
    %c0_8 = arith.constant 0 : index
    %25 = vector.load %arg4[%c0_7, %c0_8] : memref<16x128xf32, #tpu.memory_space<vmem>>, vector<16x128xf32>
    %cst = arith.constant dense<0.000000e+00> : vector<16x128xf32>
    %26 = tpu.matmul %0, %25, %cst {dimension_numbers = #tpu.dot_dimension_numbers<[1], [0], [0], [1], [0, 0, 1, 1], [], []>} : vector<16x16xf32>, vector<16x128xf32>, vector<16x128xf32> -> vector<16x128xf32>
    %c0_9 = arith.constant 0 : index
    %c0_10 = arith.constant 0 : index
    %27 = vector.load %arg5[%c0_9, %c0_10] : memref<1x128xf32, #tpu.memory_space<vmem>>, vector<1x128xf32>
    %28 = vector.broadcast %27 : vector<1x128xf32> to vector<16x128xf32>
    %29 = arith.addf %26, %28 : vector<16x128xf32>
    %30 = vector.extract_strided_slice %29 {offsets = [0, 0], sizes = [16, 32], strides = [1, 1]} : vector<16x128xf32> to vector<16x32xf32>
    %31 = vector.extract_strided_slice %29 {offsets = [0, 32], sizes = [16, 32], strides = [1, 1]} : vector<16x128xf32> to vector<16x32xf32>
    %32 = vector.extract_strided_slice %29 {offsets = [0, 64], sizes = [16, 32], strides = [1, 1]} : vector<16x128xf32> to vector<16x32xf32>
    %33 = vector.extract_strided_slice %29 {offsets = [0, 96], sizes = [16, 32], strides = [1, 1]} : vector<16x128xf32> to vector<16x32xf32>
    %34 = tpu.concatenate %30, %31, %32 in 0 : vector<16x32xf32>, vector<16x32xf32>, vector<16x32xf32> -> vector<48x32xf32>
    %cst_11 = arith.constant dense<0.000000e+00> : vector<48x32xf32>
    %35 = tpu.matmul %20, %34, %cst_11 {dimension_numbers = #tpu.dot_dimension_numbers<[1], [0], [0], [1], [0, 0, 1, 1], [], []>} : vector<48x48xf32>, vector<48x32xf32>, vector<48x32xf32> -> vector<48x32xf32>
    %c0_12 = arith.constant 0 : index
    %c0_13 = arith.constant 0 : index
    %36 = vector.load %arg6[%c0_12, %c0_13] : memref<8x32xf32, #tpu.memory_space<vmem>>, vector<8x32xf32>
    %cst_14 = arith.constant dense<0.000000e+00> : vector<48x32xf32>
    %37 = tpu.matmul %1, %36, %cst_14 {dimension_numbers = #tpu.dot_dimension_numbers<[1], [0], [0], [1], [0, 0, 1, 1], [], []>} : vector<48x8xf32>, vector<8x32xf32>, vector<48x32xf32> -> vector<48x32xf32>
    %38 = arith.addf %35, %37 : vector<48x32xf32>
    %c0_15 = arith.constant 0 : index
    %c0_16 = arith.constant 0 : index
    %39 = vector.load %arg7[%c0_15, %c0_16] : memref<1x32xf32, #tpu.memory_space<vmem>>, vector<1x32xf32>
    %40 = vector.broadcast %39 : vector<1x32xf32> to vector<48x32xf32>
    %41 = arith.addf %38, %40 : vector<48x32xf32>
    %cst_17 = arith.constant 0.000000e+00 : f32
    %42 = vector.broadcast %cst_17 : f32 to vector<48x32xf32>
    %43 = arith.cmpf ogt, %41, %42 : vector<48x32xf32>
    %44 = math.exp %41 : vector<48x32xf32>
    %cst_18 = arith.constant 1.000000e+00 : f32
    %45 = vector.broadcast %cst_18 : f32 to vector<48x32xf32>
    %46 = arith.subf %44, %45 : vector<48x32xf32>
    %47 = arith.select %43, %41, %46 : vector<48x32xi1>, vector<48x32xf32>
    %c0_19 = arith.constant 0 : index
    %c0_20 = arith.constant 0 : index
    %48 = vector.load %arg8[%c0_19, %c0_20] : memref<32x32xf32, #tpu.memory_space<vmem>>, vector<32x32xf32>
    %cst_21 = arith.constant dense<0.000000e+00> : vector<48x32xf32>
    %49 = tpu.matmul %47, %48, %cst_21 {dimension_numbers = #tpu.dot_dimension_numbers<[1], [0], [0], [1], [0, 0, 1, 1], [], []>} : vector<48x32xf32>, vector<32x32xf32>, vector<48x32xf32> -> vector<48x32xf32>
    %cst_22 = arith.constant dense<0.000000e+00> : vector<48x32xf32>
    %50 = tpu.matmul %24, %33, %cst_22 {dimension_numbers = #tpu.dot_dimension_numbers<[1], [0], [0], [1], [0, 0, 1, 1], [], []>} : vector<48x16xf32>, vector<16x32xf32>, vector<48x32xf32> -> vector<48x32xf32>
    %51 = arith.addf %49, %50 : vector<48x32xf32>
    %cst_23 = arith.constant 0.000000e+00 : f32
    %52 = vector.broadcast %cst_23 : f32 to vector<48x32xf32>
    %53 = arith.cmpf ogt, %51, %52 : vector<48x32xf32>
    %cst_24 = arith.constant 0.00999999977 : f32
    %54 = vector.broadcast %cst_24 : f32 to vector<48x32xf32>
    %55 = arith.mulf %54, %51 : vector<48x32xf32>
    %56 = arith.select %53, %51, %55 : vector<48x32xi1>, vector<48x32xf32>
    %c0_25 = arith.constant 0 : index
    %c0_26 = arith.constant 0 : index
    %57 = vector.load %arg9[%c0_25, %c0_26] : memref<1x32xf32, #tpu.memory_space<vmem>>, vector<1x32xf32>
    %cst_27 = arith.constant dense<0.000000e+00> : vector<48x1xf32>
    %58 = tpu.matmul %56, %57, %cst_27 {dimension_numbers = #tpu.dot_dimension_numbers<[1], [1], [0], [0], [0, 0, 1, 0], [], []>} : vector<48x32xf32>, vector<1x32xf32>, vector<48x1xf32> -> vector<48x1xf32>
    %cst_28 = arith.constant 0.000000e+00 : f32
    %59 = vector.broadcast %cst_28 : f32 to vector<48x1xf32>
    %60 = arith.cmpf ogt, %58, %59 : vector<48x1xf32>
    %cst_29 = arith.constant 0.00999999977 : f32
    %61 = vector.broadcast %cst_29 : f32 to vector<48x1xf32>
    %62 = arith.mulf %61, %58 : vector<48x1xf32>
    %63 = arith.select %60, %58, %62 : vector<48x1xi1>, vector<48x1xf32>
    %cst_30 = arith.constant -1.000000e+30 : f32
    %64 = vector.shape_cast %63 : vector<48x1xf32> to vector<48x1xf32>
    %65 = vector.broadcast %64 : vector<48x1xf32> to vector<48x16xf32>
    %66 = vector.broadcast %cst_30 : f32 to vector<48x16xf32>
    %67 = arith.select %10, %65, %66 : vector<48x16xi1>, vector<48x16xf32>
    %cst_31 = arith.constant dense<0xFF800000> : vector<16xf32>
    %68 = vector.multi_reduction <maximumf>, %67, %cst_31 [0] : vector<48x16xf32> to vector<16xf32>
    %69 = vector.shape_cast %68 : vector<16xf32> to vector<1x16xf32>
    %cst_32 = arith.constant dense<0.000000e+00> : vector<48x1xf32>
    %70 = tpu.matmul %22, %69, %cst_32 {dimension_numbers = #tpu.dot_dimension_numbers<[1], [1], [0], [0], [0, 0, 1, 0], [], []>} : vector<48x16xf32>, vector<1x16xf32>, vector<48x1xf32> -> vector<48x1xf32>
    %71 = arith.subf %63, %70 : vector<48x1xf32>
    %72 = math.exp %71 : vector<48x1xf32>
    %cst_33 = arith.constant dense<0.000000e+00> : vector<16x1xf32>
    %73 = tpu.matmul %22, %72, %cst_33 {dimension_numbers = #tpu.dot_dimension_numbers<[0], [0], [1], [1], [0, 1, 1, 1], [], []>} : vector<48x16xf32>, vector<48x1xf32>, vector<16x1xf32> -> vector<16x1xf32>
    %cst_34 = arith.constant dense<0.000000e+00> : vector<48x1xf32>
    %74 = tpu.matmul %22, %73, %cst_34 {dimension_numbers = #tpu.dot_dimension_numbers<[1], [0], [0], [1], [0, 0, 1, 1], [], []>} : vector<48x16xf32>, vector<16x1xf32>, vector<48x1xf32> -> vector<48x1xf32>
    %cst_35 = arith.constant 1.000000e-16 : f32
    %75 = vector.broadcast %cst_35 : f32 to vector<48x1xf32>
    %76 = arith.addf %74, %75 : vector<48x1xf32>
    %77 = arith.divf %72, %76 : vector<48x1xf32>
    %78 = arith.mulf %77, %3 : vector<48x1xf32>
    %cst_36 = arith.constant dense<0.000000e+00> : vector<16x1xf32>
    %79 = tpu.matmul %22, %78, %cst_36 {dimension_numbers = #tpu.dot_dimension_numbers<[0], [0], [1], [1], [0, 1, 1, 1], [], []>} : vector<48x16xf32>, vector<48x1xf32>, vector<16x1xf32> -> vector<16x1xf32>
    %cst_37 = arith.constant dense<0.000000e+00> : vector<48x1xf32>
    %80 = tpu.matmul %22, %79, %cst_37 {dimension_numbers = #tpu.dot_dimension_numbers<[1], [0], [0], [1], [0, 0, 1, 1], [], []>} : vector<48x16xf32>, vector<16x1xf32>, vector<48x1xf32> -> vector<48x1xf32>
    %cst_38 = arith.constant 9.99999974E-6 : f32
    %81 = vector.broadcast %cst_38 : f32 to vector<48x1xf32>
    %82 = arith.addf %80, %81 : vector<48x1xf32>
    %83 = arith.divf %78, %82 : vector<48x1xf32>
    %c0_39 = arith.constant 0 : index
    %c0_40 = arith.constant 0 : index
    %84 = vector.load %arg10[%c0_39, %c0_40] : memref<32x16xf32, #tpu.memory_space<vmem>>, vector<32x16xf32>
    %cst_41 = arith.constant dense<0.000000e+00> : vector<48x16xf32>
    %85 = tpu.matmul %47, %84, %cst_41 {dimension_numbers = #tpu.dot_dimension_numbers<[1], [0], [0], [1], [0, 0, 1, 1], [], []>} : vector<48x32xf32>, vector<32x16xf32>, vector<48x16xf32> -> vector<48x16xf32>
    %86 = vector.broadcast %83 : vector<48x1xf32> to vector<48x16xf32>
    %87 = arith.mulf %85, %86 : vector<48x16xf32>
    %cst_42 = arith.constant dense<0.000000e+00> : vector<16x16xf32>
    %88 = tpu.matmul %24, %87, %cst_42 {dimension_numbers = #tpu.dot_dimension_numbers<[0], [0], [1], [1], [0, 1, 1, 1], [], []>} : vector<48x16xf32>, vector<48x16xf32>, vector<16x16xf32> -> vector<16x16xf32>
    %c0_43 = arith.constant 0 : index
    %c0_44 = arith.constant 0 : index
    %89 = vector.load %arg11[%c0_43, %c0_44] : memref<1x16xf32, #tpu.memory_space<vmem>>, vector<1x16xf32>
    %90 = vector.broadcast %89 : vector<1x16xf32> to vector<16x16xf32>
    %91 = arith.addf %88, %90 : vector<16x16xf32>
    %92 = arith.addf %0, %91 : vector<16x16xf32>
    %cst_45 = arith.constant 0.000000e+00 : f32
    %93 = vector.broadcast %cst_45 : f32 to vector<16x16xf32>
    %94 = arith.cmpf ogt, %92, %93 : vector<16x16xf32>
    %95 = math.exp %92 : vector<16x16xf32>
    %cst_46 = arith.constant 1.000000e+00 : f32
    %96 = vector.broadcast %cst_46 : f32 to vector<16x16xf32>
    %97 = arith.subf %95, %96 : vector<16x16xf32>
    %98 = arith.select %94, %92, %97 : vector<16x16xi1>, vector<16x16xf32>
    %c0_47 = arith.constant 0 : index
    %c0_48 = arith.constant 0 : index
    %99 = vector.load %arg12[%c0_47, %c0_48] : memref<16x16xf32, #tpu.memory_space<vmem>>, vector<16x16xf32>
    tpu.vector_store %arg12[%c0_47, %c0_48], %98 {strides = array<i32>} : memref<16x16xf32, #tpu.memory_space<vmem>>, vector<16x16xf32>,
    return
  }
}

</mosaic_0001>

<llo_original>
// kernel: tpu_custom_call.1
$region0: #{tpu_custom_call.1}
  #allocation0 [shape = 'u32[]', space=smem, size = 0x4, offset = 0x4, fixed_abs, tag = 'smem constant byte address 0x4 - core index']
  #allocation1 [shape = 'u32[144,128]{1,0:T(1,128)}', space=vmem, size = 0x12000, scoped, tag = 'internal scratch']
  %s0 = inlined_call_operand.vmem [shape: f32[16,16], index: 0, kind: input, shape index: {}]
  %s1 = inlined_call_operand.vmem [shape: f32[48,8], index: 1, kind: input, shape index: {}]
  %s2 = inlined_call_operand.vmem [shape: s32[48,3], index: 2, kind: input, shape index: {}]
  %s3 = inlined_call_operand.vmem [shape: f32[48,1], index: 3, kind: input, shape index: {}]
  %s4 = inlined_call_operand.vmem [shape: f32[16,128], index: 4, kind: input, shape index: {}]
  %s5 = inlined_call_operand.vmem [shape: f32[1,128], index: 5, kind: input, shape index: {}]
  %s6 = inlined_call_operand.vmem [shape: f32[8,32], index: 6, kind: input, shape index: {}]
  %s7 = inlined_call_operand.vmem [shape: f32[1,32], index: 7, kind: input, shape index: {}]
  %s8 = inlined_call_operand.vmem [shape: f32[32,32], index: 8, kind: input, shape index: {}]
  %s9 = inlined_call_operand.vmem [shape: f32[1,32], index: 9, kind: input, shape index: {}]
  %s10 = inlined_call_operand.vmem [shape: f32[32,16], index: 10, kind: input, shape index: {}]
  %s11 = inlined_call_operand.vmem [shape: f32[1,16], index: 11, kind: input, shape index: {}]
  %s12 = inlined_call_operand.hbm [shape: f32[16,16], index: 12, kind: output, shape index: {}]
  %s13 = sld [smem:[#allocation0]]
  $region58: #{tpu_custom_call.1} parent=0
    _
  %s15 = ssub.s32 1, %s13
  %s16 = scalar_select 0, %s15, %s13
  $region1: #{tpu_custom_call.1} parent=0
    #allocation2 [shape = 'u8[8192]{0}', space=vmem, size = 0x2000, scoped, tag = 'output window, operand 0, single buffered']
    #allocation3 [shape = 's32[1]{0}', space=sflag, size = 0x4, scoped, tag = 'scoped memory for tpu_custom_call.1']
    %17 = vsyncpa [#allocation3], 0
    // Predicated region
    $region2: #{tpu_custom_call.1} parent=1 // pred_check
      _
    $region3: #{tpu_custom_call.1} parent=1 // pred_check_branch
      %19 = sbr.rel (0) target = $region5
    $region4: #{tpu_custom_call.1} parent=1 // pred_region
      _
    $region5: #{tpu_custom_call.1} parent=1 // pred_fallthru
      _
    // Predicated region
    $region6: #{tpu_custom_call.1} parent=1 // pred_check
      _
    $region7: #{tpu_custom_call.1} parent=1 // pred_check_branch
      %21 = sbr.rel (0) target = $region9
    $region8: #{tpu_custom_call.1} parent=1 // pred_region
      _
    $region9: #{tpu_custom_call.1} parent=1 // pred_fallthru
      _
    // Predicated region
    $region10: #{tpu_custom_call.1} parent=1 // pred_check
      _
    $region11: #{tpu_custom_call.1} parent=1 // pred_check_branch
      %23 = sbr.rel (0) target = $region13
    $region12: #{tpu_custom_call.1} parent=1 // pred_region
      _
    $region13: #{tpu_custom_call.1} parent=1 // pred_fallthru
      _
    // Predicated region
    $region14: #{tpu_custom_call.1} parent=1 // pred_check
      _
    $region15: #{tpu_custom_call.1} parent=1 // pred_check_branch
      %25 = sbr.rel (0) target = $region17
    $region16: #{tpu_custom_call.1} parent=1 // pred_region
      _
    $region17: #{tpu_custom_call.1} parent=1 // pred_fallthru
      _
    // Predicated region
    $region18: #{tpu_custom_call.1} parent=1 // pred_check
      _
    $region19: #{tpu_custom_call.1} parent=1 // pred_check_branch
      %27 = sbr.rel (0) target = $region21
    $region20: #{tpu_custom_call.1} parent=1 // pred_region
      _
    $region21: #{tpu_custom_call.1} parent=1 // pred_fallthru
      _
    // Predicated region
    $region22: #{tpu_custom_call.1} parent=1 // pred_check
      _
    $region23: #{tpu_custom_call.1} parent=1 // pred_check_branch
      %29 = sbr.rel (0) target = $region25
    $region24: #{tpu_custom_call.1} parent=1 // pred_region
      _
    $region25: #{tpu_custom_call.1} parent=1 // pred_fallthru
      _
    // Predicated region
    $region26: #{tpu_custom_call.1} parent=1 // pred_check
      _
    $region27: #{tpu_custom_call.1} parent=1 // pred_check_branch
      %31 = sbr.rel (0) target = $region29
    $region28: #{tpu_custom_call.1} parent=1 // pred_region
      _
    $region29: #{tpu_custom_call.1} parent=1 // pred_fallthru
      _
    // Predicated region
    $region30: #{tpu_custom_call.1} parent=1 // pred_check
      _
    $region31: #{tpu_custom_call.1} parent=1 // pred_check_branch
      %33 = sbr.rel (0) target = $region33
    $region32: #{tpu_custom_call.1} parent=1 // pred_region
      _
    $region33: #{tpu_custom_call.1} parent=1 // pred_fallthru
      _
    // Predicated region
    $region34: #{tpu_custom_call.1} parent=1 // pred_check
      _
    $region35: #{tpu_custom_call.1} parent=1 // pred_check_branch
      %35 = sbr.rel (0) target = $region37
    $region36: #{tpu_custom_call.1} parent=1 // pred_region
      _
    $region37: #{tpu_custom_call.1} parent=1 // pred_fallthru
      _
    // Predicated region
    $region38: #{tpu_custom_call.1} parent=1 // pred_check
      _
    $region39: #{tpu_custom_call.1} parent=1 // pred_check_branch
      %37 = sbr.rel (0) target = $region41
    $region40: #{tpu_custom_call.1} parent=1 // pred_region
      _
    $region41: #{tpu_custom_call.1} parent=1 // pred_fallthru
      _
    // Predicated region
    $region42: #{tpu_custom_call.1} parent=1 // pred_check
      _
    $region43: #{tpu_custom_call.1} parent=1 // pred_check_branch
      %39 = sbr.rel (0) target = $region45
    $region44: #{tpu_custom_call.1} parent=1 // pred_region
      _
    $region45: #{tpu_custom_call.1} parent=1 // pred_fallthru
      _
    // Predicated region
    $region46: #{tpu_custom_call.1} parent=1 // pred_check
      _
    $region47: #{tpu_custom_call.1} parent=1 // pred_check_branch
      %41 = sbr.rel (0) target = $region49
    $region48: #{tpu_custom_call.1} parent=1 // pred_region
      _
    $region49: #{tpu_custom_call.1} parent=1 // pred_fallthru
      _
    %v42 = vld [vmem:[%s0] sm:$0xff]
    %v43 = vld [vmem:[%s0 + $0x8] sm:$0xff]
    %v44 = vld [vmem:[%s1] sm:$0xff]
    %v45 = vld [vmem:[%s1 + $0x8] sm:$0xff]
    %v46 = vld [vmem:[%s1 + $0x10] sm:$0xff]
    %v47 = vld [vmem:[%s1 + $0x18] sm:$0xff]
    %v48 = vld [vmem:[%s1 + $0x20] sm:$0xff]
    %v49 = vld [vmem:[%s1 + $0x28] sm:$0xff]
    %v50 = vld [vmem:[%s2] sm:$0xff]
    %v51 = vld [vmem:[%s2 + $0x8] sm:$0xff]
    %v52 = vld [vmem:[%s2 + $0x10] sm:$0xff]
    %v53 = vld [vmem:[%s2 + $0x18] sm:$0xff]
    %v54 = vld [vmem:[%s2 + $0x20] sm:$0xff]
    %v55 = vld [vmem:[%s2 + $0x28] sm:$0xff]
    %v56 = vld [vmem:[%s3] sm:$0xff]
    %v57 = vld [vmem:[%s3 + $0x8] sm:$0xff]
    %v58 = vld [vmem:[%s3 + $0x10] sm:$0xff]
    %v59 = vld [vmem:[%s3 + $0x18] sm:$0xff]
    %v60 = vld [vmem:[%s3 + $0x20] sm:$0xff]
    %v61 = vld [vmem:[%s3 + $0x28] sm:$0xff]
    %v62 = vlaneseq
    %v63 = vand.u32 %v62, 127
    %64 = vset.pattern.permute.xlu0 0
    %65 = vperm.xlu0 %64, %v50
    %v66 = vpop.permute.xlu0 %65
    %67 = vset.pattern.permute.xlu0 0
    %68 = vperm.xlu0 %67, %v51
    %v69 = vpop.permute.xlu0 %68
    %70 = vset.pattern.permute.xlu0 0
    %71 = vperm.xlu0 %70, %v52
    %v72 = vpop.permute.xlu0 %71
    %73 = vset.pattern.permute.xlu0 0
    %74 = vperm.xlu0 %73, %v53
    %v75 = vpop.permute.xlu0 %74
    %76 = vset.pattern.permute.xlu0 0
    %77 = vperm.xlu0 %76, %v54
    %v78 = vpop.permute.xlu0 %77
    %79 = vset.pattern.permute.xlu0 0
    %80 = vperm.xlu0 %79, %v55
    %v81 = vpop.permute.xlu0 %80
    %vm82 = vcmp.eq.s32.totalorder %v66, %v63
    %vm83 = vcmp.eq.s32.totalorder %v69, %v63
    %vm84 = vcmp.eq.s32.totalorder %v72, %v63
    %vm85 = vcmp.eq.s32.totalorder %v75, %v63
    %vm86 = vcmp.eq.s32.totalorder %v78, %v63
    %vm87 = vcmp.eq.s32.totalorder %v81, %v63
    %88 = vset.pattern.permute.xlu0 1
    %89 = vperm.xlu0 %88, %v50
    %v90 = vpop.permute.xlu0 %89
    %91 = vset.pattern.permute.xlu0 1
    %92 = vperm.xlu0 %91, %v51
    %v93 = vpop.permute.xlu0 %92
    %94 = vset.pattern.permute.xlu0 1
    %95 = vperm.xlu0 %94, %v52
    %v96 = vpop.permute.xlu0 %95
    %97 = vset.pattern.permute.xlu0 1
    %98 = vperm.xlu0 %97, %v53
    %v99 = vpop.permute.xlu0 %98
    %100 = vset.pattern.permute.xlu0 1
    %101 = vperm.xlu0 %100, %v54
    %v102 = vpop.permute.xlu0 %101
    %103 = vset.pattern.permute.xlu0 1
    %104 = vperm.xlu0 %103, %v55
    %v105 = vpop.permute.xlu0 %104
    %vm106 = vcmp.eq.s32.totalorder %v90, %v63
    %vm107 = vcmp.eq.s32.totalorder %v93, %v63
    %vm108 = vcmp.eq.s32.totalorder %v96, %v63
    %vm109 = vcmp.eq.s32.totalorder %v99, %v63
    %vm110 = vcmp.eq.s32.totalorder %v102, %v63
    %vm111 = vcmp.eq.s32.totalorder %v105, %v63
    %112 = vset.pattern.permute.xlu0 2
    %113 = vperm.xlu0 %112, %v50
    %v114 = vpop.permute.xlu0 %113
    %115 = vset.pattern.permute.xlu0 2
    %116 = vperm.xlu0 %115, %v51
    %v117 = vpop.permute.xlu0 %116
    %118 = vset.pattern.permute.xlu0 2
    %119 = vperm.xlu0 %118, %v52
    %v120 = vpop.permute.xlu0 %119
    %121 = vset.pattern.permute.xlu0 2
    %122 = vperm.xlu0 %121, %v53
    %v123 = vpop.permute.xlu0 %122
    %124 = vset.pattern.permute.xlu0 2
    %125 = vperm.xlu0 %124, %v54
    %v126 = vpop.permute.xlu0 %125
    %127 = vset.pattern.permute.xlu0 2
    %128 = vperm.xlu0 %127, %v55
    %v129 = vpop.permute.xlu0 %128
    %vm130 = vcmp.eq.s32.totalorder %v114, %v63
    %vm131 = vcmp.eq.s32.totalorder %v117, %v63
    %vm132 = vcmp.eq.s32.totalorder %v120, %v63
    %vm133 = vcmp.eq.s32.totalorder %v123, %v63
    %vm134 = vcmp.eq.s32.totalorder %v126, %v63
    %vm135 = vcmp.eq.s32.totalorder %v129, %v63
    %v136 = vsel %vm82, 1, 0
    %v137 = vsel %vm83, 1, 0
    %v138 = vsel %vm84, 1, 0
    %v139 = vsel %vm85, 1, 0
    %v140 = vsel %vm86, 1, 0
    %v141 = vsel %vm87, 1, 0
    %v142 = vcvt.s32.f32 %v136
    %v143 = vcvt.s32.f32 %v137
    %v144 = vcvt.s32.f32 %v138
    %v145 = vcvt.s32.f32 %v139
    %v146 = vcvt.s32.f32 %v140
    %v147 = vcvt.s32.f32 %v141
    %v148 = vsel %vm106, 1, 0
    %v149 = vsel %vm107, 1, 0
    %v150 = vsel %vm108, 1, 0
    %v151 = vsel %vm109, 1, 0
    %v152 = vsel %vm110, 1, 0
    %v153 = vsel %vm111, 1, 0
    %v154 = vcvt.s32.f32 %v148
    %v155 = vcvt.s32.f32 %v149
    %v156 = vcvt.s32.f32 %v150
    %v157 = vcvt.s32.f32 %v151
    %v158 = vcvt.s32.f32 %v152
    %v159 = vcvt.s32.f32 %v153
    %v160 = vsel %vm130, 1, 0
    %v161 = vsel %vm131, 1, 0
    %v162 = vsel %vm132, 1, 0
    %v163 = vsel %vm133, 1, 0
    %v164 = vsel %vm134, 1, 0
    %v165 = vsel %vm135, 1, 0
    %v166 = vcvt.s32.f32 %v160
    %v167 = vcvt.s32.f32 %v161
    %v168 = vcvt.s32.f32 %v162
    %v169 = vcvt.s32.f32 %v163
    %v170 = vcvt.s32.f32 %v164
    %v171 = vcvt.s32.f32 %v165
    %178 = vrot.lane.b32.xlu0 %v154, 16
    %v179 = vpop.permute.xlu0 %178
    %180 = vrot.lane.b32.xlu0 %v155, 16
    %v181 = vpop.permute.xlu0 %180
    %182 = vrot.lane.b32.xlu0 %v156, 16
    %v183 = vpop.permute.xlu0 %182
    %184 = vrot.lane.b32.xlu0 %v157, 16
    %v185 = vpop.permute.xlu0 %184
    %186 = vrot.lane.b32.xlu0 %v158, 16
    %v187 = vpop.permute.xlu0 %186
    %188 = vrot.lane.b32.xlu0 %v159, 16
    %v189 = vpop.permute.xlu0 %188
    %202 = vrot.lane.b32.xlu0 %v166, 32
    %v203 = vpop.permute.xlu0 %202
    %204 = vrot.lane.b32.xlu0 %v167, 32
    %v205 = vpop.permute.xlu0 %204
    %206 = vrot.lane.b32.xlu0 %v168, 32
    %v207 = vpop.permute.xlu0 %206
    %208 = vrot.lane.b32.xlu0 %v169, 32
    %v209 = vpop.permute.xlu0 %208
    %210 = vrot.lane.b32.xlu0 %v170, 32
    %v211 = vpop.permute.xlu0 %210
    %212 = vrot.lane.b32.xlu0 %v171, 32
    %v213 = vpop.permute.xlu0 %212
    %vm220 = vcmask 130048
    %v221 = vsel %vm220, %v142, %v179
    %v222 = vsel %vm220, %v143, %v181
    %v223 = vsel %vm220, %v144, %v183
    %v224 = vsel %vm220, %v145, %v185
    %v225 = vsel %vm220, %v146, %v187
    %v226 = vsel %vm220, %v147, %v189
    %vm227 = vcmask 261120
    %v228 = vsel %vm227, %v221, %v203
    %v229 = vsel %vm227, %v222, %v205
    %v230 = vsel %vm227, %v223, %v207
    %v231 = vsel %vm227, %v224, %v209
    %v232 = vsel %vm227, %v225, %v211
    %v233 = vsel %vm227, %v226, %v213
    %v234 = vld [vmem:[%s4] sm:$0xff]
    %v235 = vld [vmem:[%s4 + $0x8] sm:$0xff]
    %v236 = vld [vmem:[%s5] sm:$0x1]
    %v238 = vlaneseq
    %v239 = vshrl.u32 %v238, 7
    %v240 = vsub.s32 0, %v239
    %v241 = vrot.slane %v236, %v240
    %v244 = vsel %vm220, %v42, 0
    %v247 = vsel %vm220, %v43, 0
    %249 = vmatprep.subr.mxu0 0.0
    %250 = vmatpush1.msra.mxu0 0.0
    %251 = vmatprep.subr.mxu0 0.0
    %252 = vmatpush1.msra.mxu0 0.0
    %253 = vmatprep.subr.mxu0 0.0
    %254 = vmatpush1.msra.mxu0 0.0
    %255 = vmatprep.subr.mxu0 0.0
    %256 = vmatpush1.msra.mxu0 0.0
    %257 = vmatprep.subr.mxu0 0.0
    %258 = vmatpush1.msra.mxu0 0.0
    %259 = vmatprep.subr.mxu0 0.0
    %260 = vmatpush1.msra.mxu0 0.0
    %261 = vmatprep.subr.mxu0 0.0
    %262 = vmatpush1.msra.mxu0 0.0
    %263 = vmatprep.subr.mxu0 0.0
    %264 = vmatpush1.msra.mxu0 0.0
    %265 = vmatprep.subr.mxu0 0.0
    %266 = vmatpush1.msra.mxu0 0.0
    %267 = vmatprep.subr.mxu0 0.0
    %268 = vmatpush1.msra.mxu0 0.0
    %269 = vmatprep.subr.mxu0 0.0
    %270 = vmatpush1.msra.mxu0 0.0
    %271 = vmatprep.subr.mxu0 0.0
    %272 = vmatpush1.msra.mxu0 0.0
    %273 = vmatprep.subr.mxu0 0.0
    %274 = vmatpush1.msra.mxu0 0.0
    %275 = vmatprep.subr.mxu0 0.0
    %276 = vmatpush1.msra.mxu0 0.0
    %277 = vmatprep.subr.mxu0 0.0
    %278 = vmatpush1.msra.mxu0 %v235
    %279 = vmatprep.subr.mxu0 0.0
    %280 = vmatpush1.msra.mxu0 %v234
    %281 = vmatprep.subr.mxu0 0.0
    %282 = vmatpush2.msra.mxu0 0.0
    %283 = vmatprep.subr.mxu0 0.0
    %284 = vmatpush2.msra.mxu0 0.0
    %285 = vmatprep.subr.mxu0 0.0
    %286 = vmatpush2.msra.mxu0 0.0
    %287 = vmatprep.subr.mxu0 0.0
    %288 = vmatpush2.msra.mxu0 0.0
    %289 = vmatprep.subr.mxu0 0.0
    %290 = vmatpush2.msra.mxu0 0.0
    %291 = vmatprep.subr.mxu0 0.0
    %292 = vmatpush2.msra.mxu0 0.0
    %293 = vmatprep.subr.mxu0 0.0
    %294 = vmatpush2.msra.mxu0 0.0
    %295 = vmatprep.subr.mxu0 0.0
    %296 = vmatpush2.msra.mxu0 0.0
    %297 = vmatprep.subr.mxu0 0.0
    %298 = vmatpush2.msra.mxu0 0.0
    %299 = vmatprep.subr.mxu0 0.0
    %300 = vmatpush2.msra.mxu0 0.0
    %301 = vmatprep.subr.mxu0 0.0
    %302 = vmatpush2.msra.mxu0 0.0
    %303 = vmatprep.subr.mxu0 0.0
    %304 = vmatpush2.msra.mxu0 0.0
    %305 = vmatprep.subr.mxu0 0.0
    %306 = vmatpush2.msra.mxu0 0.0
    %307 = vmatprep.subr.mxu0 0.0
    %308 = vmatpush2.msra.mxu0 0.0
    %309 = vmatprep.subr.mxu0 0.0
    %310 = vmatpush2.msra.mxu0 0.0
    %311 = vmatprep.subr.mxu0 0.0
    %312 = vmatpush2.msra.mxu0 0.0
    %313 = vmatprep.mubr.f32.mxu0 0.0
    %314 = vmatmul.mubr.f32.gmra.mxu0 %v244
    %v315 = vpop.f32.mrf.mxu0
    %v316 = vadd.f32 %v241, %v315
    %v317 = vpop.f32.mrf.mxu0
    %318 = vmatprep.mubr.f32.mxu0 0.0
    %319 = vmatmul.mubr.f32.gmra.mxu0 %v247
    %v320 = vpop.f32.mrf.mxu0
    %v321 = vadd.f32 %v241, %v320
    %v322 = vpop.f32.mrf.mxu0
    %323 = vdwg.mxu0
    %326 = vrot.lane.b32.xlu0 %v316, 96
    %v327 = vpop.permute.xlu0 %326
    %328 = vrot.lane.b32.xlu0 %v321, 96
    %v329 = vpop.permute.xlu0 %328
    %332 = vrot.lane.b32.xlu0 %v316, 64
    %v333 = vpop.permute.xlu0 %332
    %334 = vrot.lane.b32.xlu0 %v321, 64
    %v335 = vpop.permute.xlu0 %334
    %v338 = vld [vmem:[%s6] sm:$0xff]
    %vm339 = vcmask 64512
    %v341 = vsel %vm339, %v44, 0
    %v344 = vsel %vm339, %v45, 0
    %v347 = vsel %vm339, %v46, 0
    %v350 = vsel %vm339, %v47, 0
    %v353 = vsel %vm339, %v48, 0
    %v356 = vsel %vm339, %v49, 0
    %358 = vmatprep.subr.mxu0 0.0
    %359 = vmatpush1.msra.mxu0 0.0
    %360 = vmatprep.subr.mxu0 0.0
    %361 = vmatpush1.msra.mxu0 0.0
    %362 = vmatprep.subr.mxu0 0.0
    %363 = vmatpush1.msra.mxu0 0.0
    %364 = vmatprep.subr.mxu0 0.0
    %365 = vmatpush1.msra.mxu0 0.0
    %366 = vmatprep.subr.mxu0 0.0
    %367 = vmatpush1.msra.mxu0 0.0
    %368 = vmatprep.subr.mxu0 0.0
    %369 = vmatpush1.msra.mxu0 0.0
    %370 = vmatprep.subr.mxu0 0.0
    %371 = vmatpush1.msra.mxu0 0.0
    %372 = vmatprep.subr.mxu0 0.0
    %373 = vmatpush1.msra.mxu0 0.0
    %374 = vmatprep.subr.mxu0 0.0
    %375 = vmatpush1.msra.mxu0 0.0
    %376 = vmatprep.subr.mxu0 0.0
    %377 = vmatpush1.msra.mxu0 0.0
    %378 = vmatprep.subr.mxu0 0.0
    %379 = vmatpush1.msra.mxu0 0.0
    %380 = vmatprep.subr.mxu0 0.0
    %381 = vmatpush1.msra.mxu0 0.0
    %382 = vmatprep.subr.mxu0 0.0
    %383 = vmatpush1.msra.mxu0 0.0
    %384 = vmatprep.subr.mxu0 0.0
    %385 = vmatpush1.msra.mxu0 0.0
    %386 = vmatprep.subr.mxu0 0.0
    %387 = vmatpush1.msra.mxu0 0.0
    %388 = vmatprep.subr.mxu0 0.0
    %389 = vmatpush1.msra.mxu0 %v338
    %390 = vmatprep.subr.mxu0 0.0
    %391 = vmatpush2.msra.mxu0 0.0
    %392 = vmatprep.subr.mxu0 0.0
    %393 = vmatpush2.msra.mxu0 0.0
    %394 = vmatprep.subr.mxu0 0.0
    %395 = vmatpush2.msra.mxu0 0.0
    %396 = vmatprep.subr.mxu0 0.0
    %397 = vmatpush2.msra.mxu0 0.0
    %398 = vmatprep.subr.mxu0 0.0
    %399 = vmatpush2.msra.mxu0 0.0
    %400 = vmatprep.subr.mxu0 0.0
    %401 = vmatpush2.msra.mxu0 0.0
    %402 = vmatprep.subr.mxu0 0.0
    %403 = vmatpush2.msra.mxu0 0.0
    %404 = vmatprep.subr.mxu0 0.0
    %405 = vmatpush2.msra.mxu0 0.0
    %406 = vmatprep.subr.mxu0 0.0
    %407 = vmatpush2.msra.mxu0 0.0
    %408 = vmatprep.subr.mxu0 0.0
    %409 = vmatpush2.msra.mxu0 0.0
    %410 = vmatprep.subr.mxu0 0.0
    %411 = vmatpush2.msra.mxu0 0.0
    %412 = vmatprep.subr.mxu0 0.0
    %413 = vmatpush2.msra.mxu0 0.0
    %414 = vmatprep.subr.mxu0 0.0
    %415 = vmatpush2.msra.mxu0 0.0
    %416 = vmatprep.subr.mxu0 0.0
    %417 = vmatpush2.msra.mxu0 0.0
    %418 = vmatprep.subr.mxu0 0.0
    %419 = vmatpush2.msra.mxu0 0.0
    %420 = vmatprep.subr.mxu0 0.0
    %421 = vmatpush2.msra.mxu0 0.0
    %422 = vmatprep.mubr.f32.mxu0 0.0
    %423 = vmatmul.mubr.f32.gmra.mxu0 %v341
    %v424 = vpop.f32.mrf.mxu0
    %v425 = vadd.f32 0.0, %v424
    %v426 = vpop.f32.mrf.mxu0
    %427 = vmatprep.mubr.f32.mxu0 0.0
    %428 = vmatmul.mubr.f32.gmra.mxu0 %v344
    %v429 = vpop.f32.mrf.mxu0
    %v430 = vadd.f32 0.0, %v429
    %v431 = vpop.f32.mrf.mxu0
    %432 = vmatprep.mubr.f32.mxu0 0.0
    %433 = vmatmul.mubr.f32.gmra.mxu0 %v347
    %v434 = vpop.f32.mrf.mxu0
    %v435 = vadd.f32 0.0, %v434
    %v436 = vpop.f32.mrf.mxu0
    %437 = vmatprep.mubr.f32.mxu0 0.0
    %438 = vmatmul.mubr.f32.gmra.mxu0 %v350
    %v439 = vpop.f32.mrf.mxu0
    %v440 = vadd.f32 0.0, %v439
    %v441 = vpop.f32.mrf.mxu0
    %442 = vmatprep.mubr.f32.mxu0 0.0
    %443 = vmatmul.mubr.f32.gmra.mxu0 %v353
    %v444 = vpop.f32.mrf.mxu0
    %v445 = vadd.f32 0.0, %v444
    %v446 = vpop.f32.mrf.mxu0
    %447 = vmatprep.mubr.f32.mxu0 0.0
    %448 = vmatmul.mubr.f32.gmra.mxu0 %v356
    %v449 = vpop.f32.mrf.mxu0
    %v450 = vadd.f32 0.0, %v449
    %v451 = vpop.f32.mrf.mxu0
    %452 = vdwg.mxu0
    %vm453 = vcmask 392192
    %v455 = vsel %vm453, %v228, 0
    %v458 = vsel %vm453, %v229, 0
    %v461 = vsel %vm453, %v230, 0
    %v464 = vsel %vm453, %v231, 0
    %v467 = vsel %vm453, %v232, 0
    %v470 = vsel %vm453, %v233, 0
    %472 = vmatprep.subr.mxu0 0.0
    %473 = vmatpush1.msra.mxu0 0.0
    %474 = vmatprep.subr.mxu0 0.0
    %475 = vmatpush1.msra.mxu0 0.0
    %476 = vmatprep.subr.mxu0 0.0
    %477 = vmatpush1.msra.mxu0 0.0
    %478 = vmatprep.subr.mxu0 0.0
    %479 = vmatpush1.msra.mxu0 0.0
    %480 = vmatprep.subr.mxu0 0.0
    %481 = vmatpush1.msra.mxu0 0.0
    %482 = vmatprep.subr.mxu0 0.0
    %483 = vmatpush1.msra.mxu0 0.0
    %484 = vmatprep.subr.mxu0 0.0
    %485 = vmatpush1.msra.mxu0 0.0
    %486 = vmatprep.subr.mxu0 0.0
    %487 = vmatpush1.msra.mxu0 0.0
    %488 = vmatprep.subr.mxu0 0.0
    %489 = vmatpush1.msra.mxu0 0.0
    %490 = vmatprep.subr.mxu0 0.0
    %491 = vmatpush1.msra.mxu0 0.0
    %492 = vmatprep.subr.mxu0 0.0
    %493 = vmatpush1.msra.mxu0 %v335
    %494 = vmatprep.subr.mxu0 0.0
    %495 = vmatpush1.msra.mxu0 %v333
    %496 = vmatprep.subr.mxu0 0.0
    %497 = vmatpush1.msra.mxu0 %v329
    %498 = vmatprep.subr.mxu0 0.0
    %499 = vmatpush1.msra.mxu0 %v327
    %500 = vmatprep.subr.mxu0 0.0
    %501 = vmatpush1.msra.mxu0 %v321
    %502 = vmatprep.subr.mxu0 0.0
    %503 = vmatpush1.msra.mxu0 %v316
    %504 = vmatprep.subr.mxu0 0.0
    %505 = vmatpush2.msra.mxu0 0.0
    %506 = vmatprep.subr.mxu0 0.0
    %507 = vmatpush2.msra.mxu0 0.0
    %508 = vmatprep.subr.mxu0 0.0
    %509 = vmatpush2.msra.mxu0 0.0
    %510 = vmatprep.subr.mxu0 0.0
    %511 = vmatpush2.msra.mxu0 0.0
    %512 = vmatprep.subr.mxu0 0.0
    %513 = vmatpush2.msra.mxu0 0.0
    %514 = vmatprep.subr.mxu0 0.0
    %515 = vmatpush2.msra.mxu0 0.0
    %516 = vmatprep.subr.mxu0 0.0
    %517 = vmatpush2.msra.mxu0 0.0
    %518 = vmatprep.subr.mxu0 0.0
    %519 = vmatpush2.msra.mxu0 0.0
    %520 = vmatprep.subr.mxu0 0.0
    %521 = vmatpush2.msra.mxu0 0.0
    %522 = vmatprep.subr.mxu0 0.0
    %523 = vmatpush2.msra.mxu0 0.0
    %524 = vmatprep.subr.mxu0 0.0
    %525 = vmatpush2.msra.mxu0 0.0
    %526 = vmatprep.subr.mxu0 0.0
    %527 = vmatpush2.msra.mxu0 0.0
    %528 = vmatprep.subr.mxu0 0.0
    %529 = vmatpush2.msra.mxu0 0.0
    %530 = vmatprep.subr.mxu0 0.0
    %531 = vmatpush2.msra.mxu0 0.0
    %532 = vmatprep.subr.mxu0 0.0
    %533 = vmatpush2.msra.mxu0 0.0
    %534 = vmatprep.subr.mxu0 0.0
    %535 = vmatpush2.msra.mxu0 0.0
    %536 = vmatprep.mubr.f32.mxu0 0.0
    %537 = vmatmul.mubr.f32.gmra.mxu0 %v455
    %v538 = vpop.f32.mrf.mxu0
    %v539 = vadd.f32 %v425, %v538
    %v540 = vpop.f32.mrf.mxu0
    %541 = vmatprep.mubr.f32.mxu0 0.0
    %542 = vmatmul.mubr.f32.gmra.mxu0 %v458
    %v543 = vpop.f32.mrf.mxu0
    %v544 = vadd.f32 %v430, %v543
    %v545 = vpop.f32.mrf.mxu0
    %546 = vmatprep.mubr.f32.mxu0 0.0
    %547 = vmatmul.mubr.f32.gmra.mxu0 %v461
    %v548 = vpop.f32.mrf.mxu0
    %v549 = vadd.f32 %v435, %v548
    %v550 = vpop.f32.mrf.mxu0
    %551 = vmatprep.mubr.f32.mxu0 0.0
    %552 = vmatmul.mubr.f32.gmra.mxu0 %v464
    %v553 = vpop.f32.mrf.mxu0
    %v554 = vadd.f32 %v440, %v553
    %v555 = vpop.f32.mrf.mxu0
    %556 = vmatprep.mubr.f32.mxu0 0.0
    %557 = vmatmul.mubr.f32.gmra.mxu0 %v467
    %v558 = vpop.f32.mrf.mxu0
    %v559 = vadd.f32 %v445, %v558
    %v560 = vpop.f32.mrf.mxu0
    %561 = vmatprep.mubr.f32.mxu0 0.0
    %562 = vmatmul.mubr.f32.gmra.mxu0 %v470
    %v563 = vpop.f32.mrf.mxu0
    %v564 = vadd.f32 %v450, %v563
    %v565 = vpop.f32.mrf.mxu0
    %566 = vdwg.mxu0
    %v567 = vld [vmem:[%s7] sm:$0x1]
    %v569 = vlaneseq
    %v570 = vshrl.u32 %v569, 7
    %v571 = vsub.s32 0, %v570
    %v572 = vrot.slane %v567, %v571
    %v574 = vadd.f32 %v539, %v572
    %v575 = vadd.f32 %v544, %v572
    %v576 = vadd.f32 %v549, %v572
    %v577 = vadd.f32 %v554, %v572
    %v578 = vadd.f32 %v559, %v572
    %v579 = vadd.f32 %v564, %v572
    %vm580 = vcmp.gt.f32.partialorder %v574, 0.0
    %vm581 = vcmp.gt.f32.partialorder %v575, 0.0
    %vm582 = vcmp.gt.f32.partialorder %v576, 0.0
    %vm583 = vcmp.gt.f32.partialorder %v577, 0.0
    %vm584 = vcmp.gt.f32.partialorder %v578, 0.0
    %vm585 = vcmp.gt.f32.partialorder %v579, 0.0
    %v586 = vmul.f32 %v574, 1.442695
    %v587 = vpow.pop %v586
    %v588 = vmul.f32 %v575, 1.442695
    %v589 = vpow.pop %v588
    %v590 = vmul.f32 %v576, 1.442695
    %v591 = vpow.pop %v590
    %v592 = vmul.f32 %v577, 1.442695
    %v593 = vpow.pop %v592
    %v594 = vmul.f32 %v578, 1.442695
    %v595 = vpow.pop %v594
    %v596 = vmul.f32 %v579, 1.442695
    %v597 = vpow.pop %v596
    %v598 = vsub.f32 %v587, 1.0
    %v599 = vsub.f32 %v589, 1.0
    %v600 = vsub.f32 %v591, 1.0
    %v601 = vsub.f32 %v593, 1.0
    %v602 = vsub.f32 %v595, 1.0
    %v603 = vsub.f32 %v597, 1.0
    %v604 = vsel %vm580, %v574, %v598
    %v605 = vsel %vm581, %v575, %v599
    %v606 = vsel %vm582, %v576, %v600
    %v607 = vsel %vm583, %v577, %v601
    %v608 = vsel %vm584, %v578, %v602
    %v609 = vsel %vm585, %v579, %v603
    %v610 = vld [vmem:[%s8] sm:$0xff]
    %v611 = vld [vmem:[%s8 + $0x8] sm:$0xff]
    %v612 = vld [vmem:[%s8 + $0x10] sm:$0xff]
    %v613 = vld [vmem:[%s8 + $0x18] sm:$0xff]
    %614 = vrot.lane.b32.xlu0 %v316, 32
    %v615 = vpop.permute.xlu0 %614
    %616 = vrot.lane.b32.xlu0 %v321, 32
    %v617 = vpop.permute.xlu0 %616
    %v620 = vsel %vm220, %v154, 0
    %v622 = vsel %vm220, %v155, 0
    %v624 = vsel %vm220, %v156, 0
    %v626 = vsel %vm220, %v157, 0
    %v628 = vsel %vm220, %v158, 0
    %v630 = vsel %vm220, %v159, 0
    %632 = vmatprep.subr.mxu0 0.0
    %633 = vmatpush1.msra.mxu0 0.0
    %634 = vmatprep.subr.mxu0 0.0
    %635 = vmatpush1.msra.mxu0 0.0
    %636 = vmatprep.subr.mxu0 0.0
    %637 = vmatpush1.msra.mxu0 0.0
    %638 = vmatprep.subr.mxu0 0.0
    %639 = vmatpush1.msra.mxu0 0.0
    %640 = vmatprep.subr.mxu0 0.0
    %641 = vmatpush1.msra.mxu0 0.0
    %642 = vmatprep.subr.mxu0 0.0
    %643 = vmatpush1.msra.mxu0 0.0
    %644 = vmatprep.subr.mxu0 0.0
    %645 = vmatpush1.msra.mxu0 0.0
    %646 = vmatprep.subr.mxu0 0.0
    %647 = vmatpush1.msra.mxu0 0.0
    %648 = vmatprep.subr.mxu0 0.0
    %649 = vmatpush1.msra.mxu0 0.0
    %650 = vmatprep.subr.mxu0 0.0
    %651 = vmatpush1.msra.mxu0 0.0
    %652 = vmatprep.subr.mxu0 0.0
    %653 = vmatpush1.msra.mxu0 0.0
    %654 = vmatprep.subr.mxu0 0.0
    %655 = vmatpush1.msra.mxu0 0.0
    %656 = vmatprep.subr.mxu0 0.0
    %657 = vmatpush1.msra.mxu0 0.0
    %658 = vmatprep.subr.mxu0 0.0
    %659 = vmatpush1.msra.mxu0 0.0
    %660 = vmatprep.subr.mxu0 0.0
    %661 = vmatpush1.msra.mxu0 %v617
    %662 = vmatprep.subr.mxu0 0.0
    %663 = vmatpush1.msra.mxu0 %v615
    %664 = vmatprep.subr.mxu0 0.0
    %665 = vmatpush2.msra.mxu0 0.0
    %666 = vmatprep.subr.mxu0 0.0
    %667 = vmatpush2.msra.mxu0 0.0
    %668 = vmatprep.subr.mxu0 0.0
    %669 = vmatpush2.msra.mxu0 0.0
    %670 = vmatprep.subr.mxu0 0.0
    %671 = vmatpush2.msra.mxu0 0.0
    %672 = vmatprep.subr.mxu0 0.0
    %673 = vmatpush2.msra.mxu0 0.0
    %674 = vmatprep.subr.mxu0 0.0
    %675 = vmatpush2.msra.mxu0 0.0
    %676 = vmatprep.subr.mxu0 0.0
    %677 = vmatpush2.msra.mxu0 0.0
    %678 = vmatprep.subr.mxu0 0.0
    %679 = vmatpush2.msra.mxu0 0.0
    %680 = vmatprep.subr.mxu0 0.0
    %681 = vmatpush2.msra.mxu0 0.0
    %682 = vmatprep.subr.mxu0 0.0
    %683 = vmatpush2.msra.mxu0 0.0
    %684 = vmatprep.subr.mxu0 0.0
    %685 = vmatpush2.msra.mxu0 0.0
    %686 = vmatprep.subr.mxu0 0.0
    %687 = vmatpush2.msra.mxu0 0.0
    %688 = vmatprep.subr.mxu0 0.0
    %689 = vmatpush2.msra.mxu0 0.0
    %690 = vmatprep.subr.mxu0 0.0
    %691 = vmatpush2.msra.mxu0 0.0
    %692 = vmatprep.subr.mxu0 0.0
    %693 = vmatpush2.msra.mxu0 0.0
    %694 = vmatprep.subr.mxu0 0.0
    %695 = vmatpush2.msra.mxu0 0.0
    %696 = vmatprep.mubr.f32.mxu0 0.0
    %697 = vmatmul.mubr.f32.gmra.mxu0 %v620
    %v698 = vpop.f32.mrf.mxu0
    %v699 = vadd.f32 0.0, %v698
    %v700 = vpop.f32.mrf.mxu0
    %701 = vmatprep.mubr.f32.mxu0 0.0
    %702 = vmatmul.mubr.f32.gmra.mxu0 %v622
    %v703 = vpop.f32.mrf.mxu0
    %v704 = vadd.f32 0.0, %v703
    %v705 = vpop.f32.mrf.mxu0
    %706 = vmatprep.mubr.f32.mxu0 0.0
    %707 = vmatmul.mubr.f32.gmra.mxu0 %v624
    %v708 = vpop.f32.mrf.mxu0
    %v709 = vadd.f32 0.0, %v708
    %v710 = vpop.f32.mrf.mxu0
    %711 = vmatprep.mubr.f32.mxu0 0.0
    %712 = vmatmul.mubr.f32.gmra.mxu0 %v626
    %v713 = vpop.f32.mrf.mxu0
    %v714 = vadd.f32 0.0, %v713
    %v715 = vpop.f32.mrf.mxu0
    %716 = vmatprep.mubr.f32.mxu0 0.0
    %717 = vmatmul.mubr.f32.gmra.mxu0 %v628
    %v718 = vpop.f32.mrf.mxu0
    %v719 = vadd.f32 0.0, %v718
    %v720 = vpop.f32.mrf.mxu0
    %721 = vmatprep.mubr.f32.mxu0 0.0
    %722 = vmatmul.mubr.f32.gmra.mxu0 %v630
    %v723 = vpop.f32.mrf.mxu0
    %v724 = vadd.f32 0.0, %v723
    %v725 = vpop.f32.mrf.mxu0
    %726 = vdwg.mxu0
    %v728 = vsel %vm227, %v604, 0
    %v731 = vsel %vm227, %v605, 0
    %v734 = vsel %vm227, %v606, 0
    %v737 = vsel %vm227, %v607, 0
    %v740 = vsel %vm227, %v608, 0
    %v743 = vsel %vm227, %v609, 0
    %745 = vmatprep.subr.mxu0 0.0
    %746 = vmatpush1.msra.mxu0 0.0
    %747 = vmatprep.subr.mxu0 0.0
    %748 = vmatpush1.msra.mxu0 0.0
    %749 = vmatprep.subr.mxu0 0.0
    %750 = vmatpush1.msra.mxu0 0.0
    %751 = vmatprep.subr.mxu0 0.0
    %752 = vmatpush1.msra.mxu0 0.0
    %753 = vmatprep.subr.mxu0 0.0
    %754 = vmatpush1.msra.mxu0 0.0
    %755 = vmatprep.subr.mxu0 0.0
    %756 = vmatpush1.msra.mxu0 0.0
    %757 = vmatprep.subr.mxu0 0.0
    %758 = vmatpush1.msra.mxu0 0.0
    %759 = vmatprep.subr.mxu0 0.0
    %760 = vmatpush1.msra.mxu0 0.0
    %761 = vmatprep.subr.mxu0 0.0
    %762 = vmatpush1.msra.mxu0 0.0
    %763 = vmatprep.subr.mxu0 0.0
    %764 = vmatpush1.msra.mxu0 0.0
    %765 = vmatprep.subr.mxu0 0.0
    %766 = vmatpush1.msra.mxu0 0.0
    %767 = vmatprep.subr.mxu0 0.0
    %768 = vmatpush1.msra.mxu0 0.0
    %769 = vmatprep.subr.mxu0 0.0
    %770 = vmatpush1.msra.mxu0 %v613
    %771 = vmatprep.subr.mxu0 0.0
    %772 = vmatpush1.msra.mxu0 %v612
    %773 = vmatprep.subr.mxu0 0.0
    %774 = vmatpush1.msra.mxu0 %v611
    %775 = vmatprep.subr.mxu0 0.0
    %776 = vmatpush1.msra.mxu0 %v610
    %777 = vmatprep.subr.mxu0 0.0
    %778 = vmatpush2.msra.mxu0 0.0
    %779 = vmatprep.subr.mxu0 0.0
    %780 = vmatpush2.msra.mxu0 0.0
    %781 = vmatprep.subr.mxu0 0.0
    %782 = vmatpush2.msra.mxu0 0.0
    %783 = vmatprep.subr.mxu0 0.0
    %784 = vmatpush2.msra.mxu0 0.0
    %785 = vmatprep.subr.mxu0 0.0
    %786 = vmatpush2.msra.mxu0 0.0
    %787 = vmatprep.subr.mxu0 0.0
    %788 = vmatpush2.msra.mxu0 0.0
    %789 = vmatprep.subr.mxu0 0.0
    %790 = vmatpush2.msra.mxu0 0.0
    %791 = vmatprep.subr.mxu0 0.0
    %792 = vmatpush2.msra.mxu0 0.0
    %793 = vmatprep.subr.mxu0 0.0
    %794 = vmatpush2.msra.mxu0 0.0
    %795 = vmatprep.subr.mxu0 0.0
    %796 = vmatpush2.msra.mxu0 0.0
    %797 = vmatprep.subr.mxu0 0.0
    %798 = vmatpush2.msra.mxu0 0.0
    %799 = vmatprep.subr.mxu0 0.0
    %800 = vmatpush2.msra.mxu0 0.0
    %801 = vmatprep.subr.mxu0 0.0
    %802 = vmatpush2.msra.mxu0 0.0
    %803 = vmatprep.subr.mxu0 0.0
    %804 = vmatpush2.msra.mxu0 0.0
    %805 = vmatprep.subr.mxu0 0.0
    %806 = vmatpush2.msra.mxu0 0.0
    %807 = vmatprep.subr.mxu0 0.0
    %808 = vmatpush2.msra.mxu0 0.0
    %809 = vmatprep.mubr.f32.mxu0 0.0
    %810 = vmatmul.mubr.f32.gmra.mxu0 %v728
    %v811 = vpop.f32.mrf.mxu0
    %v812 = vadd.f32 %v699, %v811
    %v813 = vpop.f32.mrf.mxu0
    %814 = vmatprep.mubr.f32.mxu0 0.0
    %815 = vmatmul.mubr.f32.gmra.mxu0 %v731
    %v816 = vpop.f32.mrf.mxu0
    %v817 = vadd.f32 %v704, %v816
    %v818 = vpop.f32.mrf.mxu0
    %819 = vmatprep.mubr.f32.mxu0 0.0
    %820 = vmatmul.mubr.f32.gmra.mxu0 %v734
    %v821 = vpop.f32.mrf.mxu0
    %v822 = vadd.f32 %v709, %v821
    %v823 = vpop.f32.mrf.mxu0
    %824 = vmatprep.mubr.f32.mxu0 0.0
    %825 = vmatmul.mubr.f32.gmra.mxu0 %v737
    %v826 = vpop.f32.mrf.mxu0
    %v827 = vadd.f32 %v714, %v826
    %v828 = vpop.f32.mrf.mxu0
    %829 = vmatprep.mubr.f32.mxu0 0.0
    %830 = vmatmul.mubr.f32.gmra.mxu0 %v740
    %v831 = vpop.f32.mrf.mxu0
    %v832 = vadd.f32 %v719, %v831
    %v833 = vpop.f32.mrf.mxu0
    %834 = vmatprep.mubr.f32.mxu0 0.0
    %835 = vmatmul.mubr.f32.gmra.mxu0 %v743
    %v836 = vpop.f32.mrf.mxu0
    %v837 = vadd.f32 %v724, %v836
    %v838 = vpop.f32.mrf.mxu0
    %839 = vdwg.mxu0
    %vm840 = vcmp.gt.f32.partialorder %v812, 0.0
    %vm841 = vcmp.gt.f32.partialorder %v817, 0.0
    %vm842 = vcmp.gt.f32.partialorder %v822, 0.0
    %vm843 = vcmp.gt.f32.partialorder %v827, 0.0
    %vm844 = vcmp.gt.f32.partialorder %v832, 0.0
    %vm845 = vcmp.gt.f32.partialorder %v837, 0.0
    %v846 = vmul.f32 %v812, 0.01
    %v847 = vmul.f32 %v817, 0.01
    %v848 = vmul.f32 %v822, 0.01
    %v849 = vmul.f32 %v827, 0.01
    %v850 = vmul.f32 %v832, 0.01
    %v851 = vmul.f32 %v837, 0.01
    %v852 = vsel %vm840, %v812, %v846
    %v853 = vsel %vm841, %v817, %v847
    %v854 = vsel %vm842, %v822, %v848
    %v855 = vsel %vm843, %v827, %v849
    %v856 = vsel %vm844, %v832, %v850
    %v857 = vsel %vm845, %v837, %v851
    %v858 = vld [vmem:[%s9] sm:$0x1]
    %v860 = vlaneseq
    %v861 = vshrl.u32 %v860, 7
    %v862 = vsub.s32 0, %v861
    %v863 = vrot.slane %v858, %v862
    %v865 = vmul.f32 %v852, %v863
    %v866 = vmul.f32 %v853, %v863
    %v867 = vmul.f32 %v854, %v863
    %v868 = vmul.f32 %v855, %v863
    %v869 = vmul.f32 %v856, %v863
    %v870 = vmul.f32 %v857, %v863
    %v871 = vsel %vm227, %v865, 0.0
    %872 = vadd.xlane.f32.xlu0 %v871
    %v873 = vpop.xlane.xlu0 %872
    %v874 = vsel %vm227, %v866, 0.0
    %875 = vadd.xlane.f32.xlu0 %v874
    %v876 = vpop.xlane.xlu0 %875
    %v877 = vsel %vm227, %v867, 0.0
    %878 = vadd.xlane.f32.xlu0 %v877
    %v879 = vpop.xlane.xlu0 %878
    %v880 = vsel %vm227, %v868, 0.0
    %881 = vadd.xlane.f32.xlu0 %v880
    %v882 = vpop.xlane.xlu0 %881
    %v883 = vsel %vm227, %v869, 0.0
    %884 = vadd.xlane.f32.xlu0 %v883
    %v885 = vpop.xlane.xlu0 %884
    %v886 = vsel %vm227, %v870, 0.0
    %887 = vadd.xlane.f32.xlu0 %v886
    %v888 = vpop.xlane.xlu0 %887
    %vm889 = vcmp.gt.f32.partialorder %v873, 0.0
    %vm890 = vcmp.gt.f32.partialorder %v876, 0.0
    %vm891 = vcmp.gt.f32.partialorder %v879, 0.0
    %vm892 = vcmp.gt.f32.partialorder %v882, 0.0
    %vm893 = vcmp.gt.f32.partialorder %v885, 0.0
    %vm894 = vcmp.gt.f32.partialorder %v888, 0.0
    %v895 = vmul.f32 %v873, 0.01
    %v896 = vmul.f32 %v876, 0.01
    %v897 = vmul.f32 %v879, 0.01
    %v898 = vmul.f32 %v882, 0.01
    %v899 = vmul.f32 %v885, 0.01
    %v900 = vmul.f32 %v888, 0.01
    %v901 = vsel %vm889, %v873, %v895
    %v902 = vsel %vm890, %v876, %v896
    %v903 = vsel %vm891, %v879, %v897
    %v904 = vsel %vm892, %v882, %v898
    %v905 = vsel %vm893, %v885, %v899
    %v906 = vsel %vm894, %v888, %v900
    %v907 = vsel %vm106, %v901, -1e+30
    %v908 = vsel %vm107, %v902, -1e+30
    %v909 = vsel %vm108, %v903, -1e+30
    %v910 = vsel %vm109, %v904, -1e+30
    %v911 = vsel %vm110, %v905, -1e+30
    %v912 = vsel %vm111, %v906, -1e+30
    %v913 = vsel %vm220, %v907, -inf
    %v914 = vsel %vm220, %v908, -inf
    %v915 = vsel %vm220, %v909, -inf
    %v916 = vsel %vm220, %v910, -inf
    %v917 = vsel %vm220, %v911, -inf
    %v918 = vmax.f32 %v913, %v917
    %v919 = vsel %vm220, %v912, -inf
    %v920 = vmax.f32 %v914, %v919
    %v921 = vmax.f32 %v918, %v920
    %v922 = vmax.f32 %v915, %v916
    %v923 = vmax.f32 %v921, %v922
    %v924 = vrot.slane %v923, 4
    %v925 = vmax.f32 %v923, %v924
    %v926 = vrot.slane %v925, 2
    %v927 = vmax.f32 %v925, %v926
    %v928 = vrot.slane %v927, 1
    %v929 = vmax.f32 %v927, %v928
    %v930 = vmul.f32 %v154, %v929
    %v931 = vmul.f32 %v155, %v929
    %v932 = vmul.f32 %v156, %v929
    %v933 = vmul.f32 %v157, %v929
    %v934 = vmul.f32 %v158, %v929
    %v935 = vmul.f32 %v159, %v929
    %v936 = vsel %vm220, %v930, 0.0
    %937 = vadd.xlane.f32.xlu0 %v936
    %v938 = vpop.xlane.xlu0 %937
    %v939 = vsel %vm220, %v931, 0.0
    %940 = vadd.xlane.f32.xlu0 %v939
    %v941 = vpop.xlane.xlu0 %940
    %v942 = vsel %vm220, %v932, 0.0
    %943 = vadd.xlane.f32.xlu0 %v942
    %v944 = vpop.xlane.xlu0 %943
    %v945 = vsel %vm220, %v933, 0.0
    %946 = vadd.xlane.f32.xlu0 %v945
    %v947 = vpop.xlane.xlu0 %946
    %v948 = vsel %vm220, %v934, 0.0
    %949 = vadd.xlane.f32.xlu0 %v948
    %v950 = vpop.xlane.xlu0 %949
    %v951 = vsel %vm220, %v935, 0.0
    %952 = vadd.xlane.f32.xlu0 %v951
    %v953 = vpop.xlane.xlu0 %952
    %v954 = vsub.f32 %v901, %v938
    %v955 = vsub.f32 %v902, %v941
    %v956 = vsub.f32 %v903, %v944
    %v957 = vsub.f32 %v904, %v947
    %v958 = vsub.f32 %v905, %v950
    %v959 = vsub.f32 %v906, %v953
    %v960 = vmul.f32 %v954, 1.442695
    %v961 = vpow.pop %v960
    %v962 = vmul.f32 %v955, 1.442695
    %v963 = vpow.pop %v962
    %v964 = vmul.f32 %v956, 1.442695
    %v965 = vpow.pop %v964
    %v966 = vmul.f32 %v957, 1.442695
    %v967 = vpow.pop %v966
    %v968 = vmul.f32 %v958, 1.442695
    %v969 = vpow.pop %v968
    %v970 = vmul.f32 %v959, 1.442695
    %v971 = vpow.pop %v970
    %972 = vxpose.xlu0.b32.start [1/16] %v154, 128
    %973 = vxpose.xlu0.b32.cont [2/16] %v155, 128
    %974 = vxpose.xlu0.b32.cont [3/16] %v156, 128
    %975 = vxpose.xlu0.b32.cont [4/16] %v157, 128
    %976 = vxpose.xlu0.b32.cont [5/16] %v158, 128
    %977 = vxpose.xlu0.b32.cont [6/16] %v159, 128
    %978 = vxpose.xlu0.b32.cont [7/16] 0.0, 128
    %979 = vxpose.xlu0.b32.cont [8/16] 0.0, 128
    %980 = vxpose.xlu0.b32.cont [9/16] 0.0, 128
    %981 = vxpose.xlu0.b32.cont [10/16] 0.0, 128
    %982 = vxpose.xlu0.b32.cont [11/16] 0.0, 128
    %983 = vxpose.xlu0.b32.cont [12/16] 0.0, 128
    %984 = vxpose.xlu0.b32.cont [13/16] 0.0, 128
    %985 = vxpose.xlu0.b32.cont [14/16] 0.0, 128
    %986 = vxpose.xlu0.b32.cont [15/16] 0.0, 128
    %987 = vxpose.xlu0.b32.end [16/16] 0.0, 128
    %v988 = vpop.trf.xlu0
    %v989 = vpop.trf.xlu0
    %v990 = vpop.trf.xlu0
    %v991 = vpop.trf.xlu0
    %v992 = vpop.trf.xlu0
    %v993 = vpop.trf.xlu0
    %v994 = vpop.trf.xlu0
    %v995 = vpop.trf.xlu0
    %v996 = vpop.trf.xlu0
    %v997 = vpop.trf.xlu0
    %v998 = vpop.trf.xlu0
    %v999 = vpop.trf.xlu0
    %v1000 = vpop.trf.xlu0
    %v1001 = vpop.trf.xlu0
    %v1002 = vpop.trf.xlu0
    %v1003 = vpop.trf.xlu0
    %v1005 = vsel %vm453, %v988, 0
    %v1008 = vsel %vm453, %v989, 0
    %1010 = vmatprep.subr.mxu0 0.0
    %1011 = vmatpush1.msra.mxu0 0.0
    %1012 = vmatprep.subr.mxu0 0.0
    %1013 = vmatpush1.msra.mxu0 0.0
    %1014 = vmatprep.subr.mxu0 0.0
    %1015 = vmatpush1.msra.mxu0 0.0
    %1016 = vmatprep.subr.mxu0 0.0
    %1017 = vmatpush1.msra.mxu0 0.0
    %1018 = vmatprep.subr.mxu0 0.0
    %1019 = vmatpush1.msra.mxu0 0.0
    %1020 = vmatprep.subr.mxu0 0.0
    %1021 = vmatpush1.msra.mxu0 0.0
    %1022 = vmatprep.subr.mxu0 0.0
    %1023 = vmatpush1.msra.mxu0 0.0
    %1024 = vmatprep.subr.mxu0 0.0
    %1025 = vmatpush1.msra.mxu0 0.0
    %1026 = vmatprep.subr.mxu0 0.0
    %1027 = vmatpush1.msra.mxu0 0.0
    %1028 = vmatprep.subr.mxu0 0.0
    %1029 = vmatpush1.msra.mxu0 0.0
    %1030 = vmatprep.subr.mxu0 0.0
    %1031 = vmatpush1.msra.mxu0 %v971
    %1032 = vmatprep.subr.mxu0 0.0
    %1033 = vmatpush1.msra.mxu0 %v969
    %1034 = vmatprep.subr.mxu0 0.0
    %1035 = vmatpush1.msra.mxu0 %v967
    %1036 = vmatprep.subr.mxu0 0.0
    %1037 = vmatpush1.msra.mxu0 %v965
    %1038 = vmatprep.subr.mxu0 0.0
    %1039 = vmatpush1.msra.mxu0 %v963
    %1040 = vmatprep.subr.mxu0 0.0
    %1041 = vmatpush1.msra.mxu0 %v961
    %1042 = vmatprep.subr.mxu0 0.0
    %1043 = vmatpush2.msra.mxu0 0.0
    %1044 = vmatprep.subr.mxu0 0.0
    %1045 = vmatpush2.msra.mxu0 0.0
    %1046 = vmatprep.subr.mxu0 0.0
    %1047 = vmatpush2.msra.mxu0 0.0
    %1048 = vmatprep.subr.mxu0 0.0
    %1049 = vmatpush2.msra.mxu0 0.0
    %1050 = vmatprep.subr.mxu0 0.0
    %1051 = vmatpush2.msra.mxu0 0.0
    %1052 = vmatprep.subr.mxu0 0.0
    %1053 = vmatpush2.msra.mxu0 0.0
    %1054 = vmatprep.subr.mxu0 0.0
    %1055 = vmatpush2.msra.mxu0 0.0
    %1056 = vmatprep.subr.mxu0 0.0
    %1057 = vmatpush2.msra.mxu0 0.0
    %1058 = vmatprep.subr.mxu0 0.0
    %1059 = vmatpush2.msra.mxu0 0.0
    %1060 = vmatprep.subr.mxu0 0.0
    %1061 = vmatpush2.msra.mxu0 0.0
    %1062 = vmatprep.subr.mxu0 0.0
    %1063 = vmatpush2.msra.mxu0 0.0
    %1064 = vmatprep.subr.mxu0 0.0
    %1065 = vmatpush2.msra.mxu0 0.0
    %1066 = vmatprep.subr.mxu0 0.0
    %1067 = vmatpush2.msra.mxu0 0.0
    %1068 = vmatprep.subr.mxu0 0.0
    %1069 = vmatpush2.msra.mxu0 0.0
    %1070 = vmatprep.subr.mxu0 0.0
    %1071 = vmatpush2.msra.mxu0 0.0
    %1072 = vmatprep.subr.mxu0 0.0
    %1073 = vmatpush2.msra.mxu0 0.0
    %1074 = vmatprep.mubr.f32.mxu0 0.0
    %1075 = vmatmul.mubr.f32.gmra.mxu0 %v1005
    %v1076 = vpop.f32.mrf.mxu0
    %v1077 = vadd.f32 0.0, %v1076
    %v1078 = vpop.f32.mrf.mxu0
    %1079 = vmatprep.mubr.f32.mxu0 0.0
    %1080 = vmatmul.mubr.f32.gmra.mxu0 %v1008
    %v1081 = vpop.f32.mrf.mxu0
    %v1082 = vadd.f32 0.0, %v1081
    %v1083 = vpop.f32.mrf.mxu0
    %1084 = vdwg.mxu0
    %1085 = vmatprep.subr.mxu0 0.0
    %1086 = vmatpush1.msra.mxu0 0.0
    %1087 = vmatprep.subr.mxu0 0.0
    %1088 = vmatpush1.msra.mxu0 0.0
    %1089 = vmatprep.subr.mxu0 0.0
    %1090 = vmatpush1.msra.mxu0 0.0
    %1091 = vmatprep.subr.mxu0 0.0
    %1092 = vmatpush1.msra.mxu0 0.0
    %1093 = vmatprep.subr.mxu0 0.0
    %1094 = vmatpush1.msra.mxu0 0.0
    %1095 = vmatprep.subr.mxu0 0.0
    %1096 = vmatpush1.msra.mxu0 0.0
    %1097 = vmatprep.subr.mxu0 0.0
    %1098 = vmatpush1.msra.mxu0 0.0
    %1099 = vmatprep.subr.mxu0 0.0
    %1100 = vmatpush1.msra.mxu0 0.0
    %1101 = vmatprep.subr.mxu0 0.0
    %1102 = vmatpush1.msra.mxu0 0.0
    %1103 = vmatprep.subr.mxu0 0.0
    %1104 = vmatpush1.msra.mxu0 0.0
    %1105 = vmatprep.subr.mxu0 0.0
    %1106 = vmatpush1.msra.mxu0 0.0
    %1107 = vmatprep.subr.mxu0 0.0
    %1108 = vmatpush1.msra.mxu0 0.0
    %1109 = vmatprep.subr.mxu0 0.0
    %1110 = vmatpush1.msra.mxu0 0.0
    %1111 = vmatprep.subr.mxu0 0.0
    %1112 = vmatpush1.msra.mxu0 0.0
    %1113 = vmatprep.subr.mxu0 0.0
    %1114 = vmatpush1.msra.mxu0 %v1082
    %1115 = vmatprep.subr.mxu0 0.0
    %1116 = vmatpush1.msra.mxu0 %v1077
    %1117 = vmatprep.subr.mxu0 0.0
    %1118 = vmatpush2.msra.mxu0 0.0
    %1119 = vmatprep.subr.mxu0 0.0
    %1120 = vmatpush2.msra.mxu0 0.0
    %1121 = vmatprep.subr.mxu0 0.0
    %1122 = vmatpush2.msra.mxu0 0.0
    %1123 = vmatprep.subr.mxu0 0.0
    %1124 = vmatpush2.msra.mxu0 0.0
    %1125 = vmatprep.subr.mxu0 0.0
    %1126 = vmatpush2.msra.mxu0 0.0
    %1127 = vmatprep.subr.mxu0 0.0
    %1128 = vmatpush2.msra.mxu0 0.0
    %1129 = vmatprep.subr.mxu0 0.0
    %1130 = vmatpush2.msra.mxu0 0.0
    %1131 = vmatprep.subr.mxu0 0.0
    %1132 = vmatpush2.msra.mxu0 0.0
    %1133 = vmatprep.subr.mxu0 0.0
    %1134 = vmatpush2.msra.mxu0 0.0
    %1135 = vmatprep.subr.mxu0 0.0
    %1136 = vmatpush2.msra.mxu0 0.0
    %1137 = vmatprep.subr.mxu0 0.0
    %1138 = vmatpush2.msra.mxu0 0.0
    %1139 = vmatprep.subr.mxu0 0.0
    %1140 = vmatpush2.msra.mxu0 0.0
    %1141 = vmatprep.subr.mxu0 0.0
    %1142 = vmatpush2.msra.mxu0 0.0
    %1143 = vmatprep.subr.mxu0 0.0
    %1144 = vmatpush2.msra.mxu0 0.0
    %1145 = vmatprep.subr.mxu0 0.0
    %1146 = vmatpush2.msra.mxu0 0.0
    %1147 = vmatprep.subr.mxu0 0.0
    %1148 = vmatpush2.msra.mxu0 0.0
    %1149 = vmatprep.mubr.f32.mxu0 0.0
    %1150 = vmatmul.mubr.f32.gmra.mxu0 %v620
    %v1151 = vpop.f32.mrf.mxu0
    %v1152 = vadd.f32 1e-16, %v1151
    %v1153 = vpop.f32.mrf.mxu0
    %1154 = vmatprep.mubr.f32.mxu0 0.0
    %1155 = vmatmul.mubr.f32.gmra.mxu0 %v622
    %v1156 = vpop.f32.mrf.mxu0
    %v1157 = vadd.f32 1e-16, %v1156
    %v1158 = vpop.f32.mrf.mxu0
    %1159 = vmatprep.mubr.f32.mxu0 0.0
    %1160 = vmatmul.mubr.f32.gmra.mxu0 %v624
    %v1161 = vpop.f32.mrf.mxu0
    %v1162 = vadd.f32 1e-16, %v1161
    %v1163 = vpop.f32.mrf.mxu0
    %1164 = vmatprep.mubr.f32.mxu0 0.0
    %1165 = vmatmul.mubr.f32.gmra.mxu0 %v626
    %v1166 = vpop.f32.mrf.mxu0
    %v1167 = vadd.f32 1e-16, %v1166
    %v1168 = vpop.f32.mrf.mxu0
    %1169 = vmatprep.mubr.f32.mxu0 0.0
    %1170 = vmatmul.mubr.f32.gmra.mxu0 %v628
    %v1171 = vpop.f32.mrf.mxu0
    %v1172 = vadd.f32 1e-16, %v1171
    %v1173 = vpop.f32.mrf.mxu0
    %1174 = vmatprep.mubr.f32.mxu0 0.0
    %1175 = vmatmul.mubr.f32.gmra.mxu0 %v630
    %v1176 = vpop.f32.mrf.mxu0
    %v1177 = vadd.f32 1e-16, %v1176
    %v1178 = vpop.f32.mrf.mxu0
    %1179 = vdwg.mxu0
    %v1180 = vrcp.pop %v1152
    %v1181 = vmul.f32 %v961, %v1180
    %v1182 = vrcp.pop %v1157
    %v1183 = vmul.f32 %v963, %v1182
    %v1184 = vrcp.pop %v1162
    %v1185 = vmul.f32 %v965, %v1184
    %v1186 = vrcp.pop %v1167
    %v1187 = vmul.f32 %v967, %v1186
    %v1188 = vrcp.pop %v1172
    %v1189 = vmul.f32 %v969, %v1188
    %v1190 = vrcp.pop %v1177
    %v1191 = vmul.f32 %v971, %v1190
    %v1192 = vmul.f32 %v1181, %v56
    %v1193 = vmul.f32 %v1183, %v57
    %v1194 = vmul.f32 %v1185, %v58
    %v1195 = vmul.f32 %v1187, %v59
    %v1196 = vmul.f32 %v1189, %v60
    %v1197 = vmul.f32 %v1191, %v61
    %1198 = vmatprep.subr.mxu0 0.0
    %1199 = vmatpush1.msra.mxu0 0.0
    %1200 = vmatprep.subr.mxu0 0.0
    %1201 = vmatpush1.msra.mxu0 0.0
    %1202 = vmatprep.subr.mxu0 0.0
    %1203 = vmatpush1.msra.mxu0 0.0
    %1204 = vmatprep.subr.mxu0 0.0
    %1205 = vmatpush1.msra.mxu0 0.0
    %1206 = vmatprep.subr.mxu0 0.0
    %1207 = vmatpush1.msra.mxu0 0.0
    %1208 = vmatprep.subr.mxu0 0.0
    %1209 = vmatpush1.msra.mxu0 0.0
    %1210 = vmatprep.subr.mxu0 0.0
    %1211 = vmatpush1.msra.mxu0 0.0
    %1212 = vmatprep.subr.mxu0 0.0
    %1213 = vmatpush1.msra.mxu0 0.0
    %1214 = vmatprep.subr.mxu0 0.0
    %1215 = vmatpush1.msra.mxu0 0.0
    %1216 = vmatprep.subr.mxu0 0.0
    %1217 = vmatpush1.msra.mxu0 0.0
    %1218 = vmatprep.subr.mxu0 0.0
    %1219 = vmatpush1.msra.mxu0 %v1197
    %1220 = vmatprep.subr.mxu0 0.0
    %1221 = vmatpush1.msra.mxu0 %v1196
    %1222 = vmatprep.subr.mxu0 0.0
    %1223 = vmatpush1.msra.mxu0 %v1195
    %1224 = vmatprep.subr.mxu0 0.0
    %1225 = vmatpush1.msra.mxu0 %v1194
    %1226 = vmatprep.subr.mxu0 0.0
    %1227 = vmatpush1.msra.mxu0 %v1193
    %1228 = vmatprep.subr.mxu0 0.0
    %1229 = vmatpush1.msra.mxu0 %v1192
    %1230 = vmatprep.subr.mxu0 0.0
    %1231 = vmatpush2.msra.mxu0 0.0
    %1232 = vmatprep.subr.mxu0 0.0
    %1233 = vmatpush2.msra.mxu0 0.0
    %1234 = vmatprep.subr.mxu0 0.0
    %1235 = vmatpush2.msra.mxu0 0.0
    %1236 = vmatprep.subr.mxu0 0.0
    %1237 = vmatpush2.msra.mxu0 0.0
    %1238 = vmatprep.subr.mxu0 0.0
    %1239 = vmatpush2.msra.mxu0 0.0
    %1240 = vmatprep.subr.mxu0 0.0
    %1241 = vmatpush2.msra.mxu0 0.0
    %1242 = vmatprep.subr.mxu0 0.0
    %1243 = vmatpush2.msra.mxu0 0.0
    %1244 = vmatprep.subr.mxu0 0.0
    %1245 = vmatpush2.msra.mxu0 0.0
    %1246 = vmatprep.subr.mxu0 0.0
    %1247 = vmatpush2.msra.mxu0 0.0
    %1248 = vmatprep.subr.mxu0 0.0
    %1249 = vmatpush2.msra.mxu0 0.0
    %1250 = vmatprep.subr.mxu0 0.0
    %1251 = vmatpush2.msra.mxu0 0.0
    %1252 = vmatprep.subr.mxu0 0.0
    %1253 = vmatpush2.msra.mxu0 0.0
    %1254 = vmatprep.subr.mxu0 0.0
    %1255 = vmatpush2.msra.mxu0 0.0
    %1256 = vmatprep.subr.mxu0 0.0
    %1257 = vmatpush2.msra.mxu0 0.0
    %1258 = vmatprep.subr.mxu0 0.0
    %1259 = vmatpush2.msra.mxu0 0.0
    %1260 = vmatprep.subr.mxu0 0.0
    %1261 = vmatpush2.msra.mxu0 0.0
    %1262 = vmatprep.mubr.f32.mxu0 0.0
    %1263 = vmatmul.mubr.f32.gmra.mxu0 %v1005
    %v1264 = vpop.f32.mrf.mxu0
    %v1265 = vadd.f32 0.0, %v1264
    %v1266 = vpop.f32.mrf.mxu0
    %1267 = vmatprep.mubr.f32.mxu0 0.0
    %1268 = vmatmul.mubr.f32.gmra.mxu0 %v1008
    %v1269 = vpop.f32.mrf.mxu0
    %v1270 = vadd.f32 0.0, %v1269
    %v1271 = vpop.f32.mrf.mxu0
    %1272 = vdwg.mxu0
    %1273 = vmatprep.subr.mxu0 0.0
    %1274 = vmatpush1.msra.mxu0 0.0
    %1275 = vmatprep.subr.mxu0 0.0
    %1276 = vmatpush1.msra.mxu0 0.0
    %1277 = vmatprep.subr.mxu0 0.0
    %1278 = vmatpush1.msra.mxu0 0.0
    %1279 = vmatprep.subr.mxu0 0.0
    %1280 = vmatpush1.msra.mxu0 0.0
    %1281 = vmatprep.subr.mxu0 0.0
    %1282 = vmatpush1.msra.mxu0 0.0
    %1283 = vmatprep.subr.mxu0 0.0
    %1284 = vmatpush1.msra.mxu0 0.0
    %1285 = vmatprep.subr.mxu0 0.0
    %1286 = vmatpush1.msra.mxu0 0.0
    %1287 = vmatprep.subr.mxu0 0.0
    %1288 = vmatpush1.msra.mxu0 0.0
    %1289 = vmatprep.subr.mxu0 0.0
    %1290 = vmatpush1.msra.mxu0 0.0
    %1291 = vmatprep.subr.mxu0 0.0
    %1292 = vmatpush1.msra.mxu0 0.0
    %1293 = vmatprep.subr.mxu0 0.0
    %1294 = vmatpush1.msra.mxu0 0.0
    %1295 = vmatprep.subr.mxu0 0.0
    %1296 = vmatpush1.msra.mxu0 0.0
    %1297 = vmatprep.subr.mxu0 0.0
    %1298 = vmatpush1.msra.mxu0 0.0
    %1299 = vmatprep.subr.mxu0 0.0
    %1300 = vmatpush1.msra.mxu0 0.0
    %1301 = vmatprep.subr.mxu0 0.0
    %1302 = vmatpush1.msra.mxu0 %v1270
    %1303 = vmatprep.subr.mxu0 0.0
    %1304 = vmatpush1.msra.mxu0 %v1265
    %1305 = vmatprep.subr.mxu0 0.0
    %1306 = vmatpush2.msra.mxu0 0.0
    %1307 = vmatprep.subr.mxu0 0.0
    %1308 = vmatpush2.msra.mxu0 0.0
    %1309 = vmatprep.subr.mxu0 0.0
    %1310 = vmatpush2.msra.mxu0 0.0
    %1311 = vmatprep.subr.mxu0 0.0
    %1312 = vmatpush2.msra.mxu0 0.0
    %1313 = vmatprep.subr.mxu0 0.0
    %1314 = vmatpush2.msra.mxu0 0.0
    %1315 = vmatprep.subr.mxu0 0.0
    %1316 = vmatpush2.msra.mxu0 0.0
    %1317 = vmatprep.subr.mxu0 0.0
    %1318 = vmatpush2.msra.mxu0 0.0
    %1319 = vmatprep.subr.mxu0 0.0
    %1320 = vmatpush2.msra.mxu0 0.0
    %1321 = vmatprep.subr.mxu0 0.0
    %1322 = vmatpush2.msra.mxu0 0.0
    %1323 = vmatprep.subr.mxu0 0.0
    %1324 = vmatpush2.msra.mxu0 0.0
    %1325 = vmatprep.subr.mxu0 0.0
    %1326 = vmatpush2.msra.mxu0 0.0
    %1327 = vmatprep.subr.mxu0 0.0
    %1328 = vmatpush2.msra.mxu0 0.0
    %1329 = vmatprep.subr.mxu0 0.0
    %1330 = vmatpush2.msra.mxu0 0.0
    %1331 = vmatprep.subr.mxu0 0.0
    %1332 = vmatpush2.msra.mxu0 0.0
    %1333 = vmatprep.subr.mxu0 0.0
    %1334 = vmatpush2.msra.mxu0 0.0
    %1335 = vmatprep.subr.mxu0 0.0
    %1336 = vmatpush2.msra.mxu0 0.0
    %1337 = vmatprep.mubr.f32.mxu0 0.0
    %1338 = vmatmul.mubr.f32.gmra.mxu0 %v620
    %v1339 = vpop.f32.mrf.mxu0
    %v1340 = vadd.f32 1e-05, %v1339
    %v1341 = vpop.f32.mrf.mxu0
    %1342 = vmatprep.mubr.f32.mxu0 0.0
    %1343 = vmatmul.mubr.f32.gmra.mxu0 %v622
    %v1344 = vpop.f32.mrf.mxu0
    %v1345 = vadd.f32 1e-05, %v1344
    %v1346 = vpop.f32.mrf.mxu0
    %1347 = vmatprep.mubr.f32.mxu0 0.0
    %1348 = vmatmul.mubr.f32.gmra.mxu0 %v624
    %v1349 = vpop.f32.mrf.mxu0
    %v1350 = vadd.f32 1e-05, %v1349
    %v1351 = vpop.f32.mrf.mxu0
    %1352 = vmatprep.mubr.f32.mxu0 0.0
    %1353 = vmatmul.mubr.f32.gmra.mxu0 %v626
    %v1354 = vpop.f32.mrf.mxu0
    %v1355 = vadd.f32 1e-05, %v1354
    %v1356 = vpop.f32.mrf.mxu0
    %1357 = vmatprep.mubr.f32.mxu0 0.0
    %1358 = vmatmul.mubr.f32.gmra.mxu0 %v628
    %v1359 = vpop.f32.mrf.mxu0
    %v1360 = vadd.f32 1e-05, %v1359
    %v1361 = vpop.f32.mrf.mxu0
    %1362 = vmatprep.mubr.f32.mxu0 0.0
    %1363 = vmatmul.mubr.f32.gmra.mxu0 %v630
    %v1364 = vpop.f32.mrf.mxu0
    %v1365 = vadd.f32 1e-05, %v1364
    %v1366 = vpop.f32.mrf.mxu0
    %1367 = vdwg.mxu0
    %v1368 = vrcp.pop %v1340
    %v1369 = vmul.f32 %v1192, %v1368
    %v1370 = vrcp.pop %v1345
    %v1371 = vmul.f32 %v1193, %v1370
    %v1372 = vrcp.pop %v1350
    %v1373 = vmul.f32 %v1194, %v1372
    %v1374 = vrcp.pop %v1355
    %v1375 = vmul.f32 %v1195, %v1374
    %v1376 = vrcp.pop %v1360
    %v1377 = vmul.f32 %v1196, %v1376
    %v1378 = vrcp.pop %v1365
    %v1379 = vmul.f32 %v1197, %v1378
    %v1380 = vld [vmem:[%s10] sm:$0xff]
    %v1381 = vld [vmem:[%s10 + $0x8] sm:$0xff]
    %v1382 = vld [vmem:[%s10 + $0x10] sm:$0xff]
    %v1383 = vld [vmem:[%s10 + $0x18] sm:$0xff]
    %1384 = vmatprep.subr.mxu0 0.0
    %1385 = vmatpush1.msra.mxu0 0.0
    %1386 = vmatprep.subr.mxu0 0.0
    %1387 = vmatpush1.msra.mxu0 0.0
    %1388 = vmatprep.subr.mxu0 0.0
    %1389 = vmatpush1.msra.mxu0 0.0
    %1390 = vmatprep.subr.mxu0 0.0
    %1391 = vmatpush1.msra.mxu0 0.0
    %1392 = vmatprep.subr.mxu0 0.0
    %1393 = vmatpush1.msra.mxu0 0.0
    %1394 = vmatprep.subr.mxu0 0.0
    %1395 = vmatpush1.msra.mxu0 0.0
    %1396 = vmatprep.subr.mxu0 0.0
    %1397 = vmatpush1.msra.mxu0 0.0
    %1398 = vmatprep.subr.mxu0 0.0
    %1399 = vmatpush1.msra.mxu0 0.0
    %1400 = vmatprep.subr.mxu0 0.0
    %1401 = vmatpush1.msra.mxu0 0.0
    %1402 = vmatprep.subr.mxu0 0.0
    %1403 = vmatpush1.msra.mxu0 0.0
    %1404 = vmatprep.subr.mxu0 0.0
    %1405 = vmatpush1.msra.mxu0 0.0
    %1406 = vmatprep.subr.mxu0 0.0
    %1407 = vmatpush1.msra.mxu0 0.0
    %1408 = vmatprep.subr.mxu0 0.0
    %1409 = vmatpush1.msra.mxu0 %v1383
    %1410 = vmatprep.subr.mxu0 0.0
    %1411 = vmatpush1.msra.mxu0 %v1382
    %1412 = vmatprep.subr.mxu0 0.0
    %1413 = vmatpush1.msra.mxu0 %v1381
    %1414 = vmatprep.subr.mxu0 0.0
    %1415 = vmatpush1.msra.mxu0 %v1380
    %1416 = vmatprep.subr.mxu0 0.0
    %1417 = vmatpush2.msra.mxu0 0.0
    %1418 = vmatprep.subr.mxu0 0.0
    %1419 = vmatpush2.msra.mxu0 0.0
    %1420 = vmatprep.subr.mxu0 0.0
    %1421 = vmatpush2.msra.mxu0 0.0
    %1422 = vmatprep.subr.mxu0 0.0
    %1423 = vmatpush2.msra.mxu0 0.0
    %1424 = vmatprep.subr.mxu0 0.0
    %1425 = vmatpush2.msra.mxu0 0.0
    %1426 = vmatprep.subr.mxu0 0.0
    %1427 = vmatpush2.msra.mxu0 0.0
    %1428 = vmatprep.subr.mxu0 0.0
    %1429 = vmatpush2.msra.mxu0 0.0
    %1430 = vmatprep.subr.mxu0 0.0
    %1431 = vmatpush2.msra.mxu0 0.0
    %1432 = vmatprep.subr.mxu0 0.0
    %1433 = vmatpush2.msra.mxu0 0.0
    %1434 = vmatprep.subr.mxu0 0.0
    %1435 = vmatpush2.msra.mxu0 0.0
    %1436 = vmatprep.subr.mxu0 0.0
    %1437 = vmatpush2.msra.mxu0 0.0
    %1438 = vmatprep.subr.mxu0 0.0
    %1439 = vmatpush2.msra.mxu0 0.0
    %1440 = vmatprep.subr.mxu0 0.0
    %1441 = vmatpush2.msra.mxu0 0.0
    %1442 = vmatprep.subr.mxu0 0.0
    %1443 = vmatpush2.msra.mxu0 0.0
    %1444 = vmatprep.subr.mxu0 0.0
    %1445 = vmatpush2.msra.mxu0 0.0
    %1446 = vmatprep.subr.mxu0 0.0
    %1447 = vmatpush2.msra.mxu0 0.0
    %1448 = vmatprep.mubr.f32.mxu0 0.0
    %1449 = vmatmul.mubr.f32.gmra.mxu0 %v728
    %v1450 = vpop.f32.mrf.mxu0
    %v1451 = vadd.f32 0.0, %v1450
    %v1452 = vpop.f32.mrf.mxu0
    %1453 = vmatprep.mubr.f32.mxu0 0.0
    %1454 = vmatmul.mubr.f32.gmra.mxu0 %v731
    %v1455 = vpop.f32.mrf.mxu0
    %v1456 = vadd.f32 0.0, %v1455
    %v1457 = vpop.f32.mrf.mxu0
    %1458 = vmatprep.mubr.f32.mxu0 0.0
    %1459 = vmatmul.mubr.f32.gmra.mxu0 %v734
    %v1460 = vpop.f32.mrf.mxu0
    %v1461 = vadd.f32 0.0, %v1460
    %v1462 = vpop.f32.mrf.mxu0
    %1463 = vmatprep.mubr.f32.mxu0 0.0
    %1464 = vmatmul.mubr.f32.gmra.mxu0 %v737
    %v1465 = vpop.f32.mrf.mxu0
    %v1466 = vadd.f32 0.0, %v1465
    %v1467 = vpop.f32.mrf.mxu0
    %1468 = vmatprep.mubr.f32.mxu0 0.0
    %1469 = vmatmul.mubr.f32.gmra.mxu0 %v740
    %v1470 = vpop.f32.mrf.mxu0
    %v1471 = vadd.f32 0.0, %v1470
    %v1472 = vpop.f32.mrf.mxu0
    %1473 = vmatprep.mubr.f32.mxu0 0.0
    %1474 = vmatmul.mubr.f32.gmra.mxu0 %v743
    %v1475 = vpop.f32.mrf.mxu0
    %v1476 = vadd.f32 0.0, %v1475
    %v1477 = vpop.f32.mrf.mxu0
    %1478 = vdwg.mxu0
    %1480 = vset.pattern.permute.xlu0 0
    %1481 = vperm.xlu0 %1480, %v1369
    %v1482 = vpop.permute.xlu0 %1481
    %1485 = vset.pattern.permute.xlu0 0
    %1486 = vperm.xlu0 %1485, %v1371
    %v1487 = vpop.permute.xlu0 %1486
    %1490 = vset.pattern.permute.xlu0 0
    %1491 = vperm.xlu0 %1490, %v1373
    %v1492 = vpop.permute.xlu0 %1491
    %1495 = vset.pattern.permute.xlu0 0
    %1496 = vperm.xlu0 %1495, %v1375
    %v1497 = vpop.permute.xlu0 %1496
    %1500 = vset.pattern.permute.xlu0 0
    %1501 = vperm.xlu0 %1500, %v1377
    %v1502 = vpop.permute.xlu0 %1501
    %1505 = vset.pattern.permute.xlu0 0
    %1506 = vperm.xlu0 %1505, %v1379
    %v1507 = vpop.permute.xlu0 %1506
    %v1509 = vmul.f32 %v1451, %v1482
    %v1510 = vmul.f32 %v1456, %v1487
    %v1511 = vmul.f32 %v1461, %v1492
    %v1512 = vmul.f32 %v1466, %v1497
    %v1513 = vmul.f32 %v1471, %v1502
    %v1514 = vmul.f32 %v1476, %v1507
    %v1515 = vld [vmem:[%s11] sm:$0x1]
    %v1517 = vlaneseq
    %v1518 = vshrl.u32 %v1517, 7
    %v1519 = vsub.s32 0, %v1518
    %v1520 = vrot.slane %v1515, %v1519
    %1522 = vmatprep.subr.mxu0 0.0
    %1523 = vmatpush1.msra.mxu0 0.0
    %1524 = vmatprep.subr.mxu0 0.0
    %1525 = vmatpush1.msra.mxu0 0.0
    %1526 = vmatprep.subr.mxu0 0.0
    %1527 = vmatpush1.msra.mxu0 0.0
    %1528 = vmatprep.subr.mxu0 0.0
    %1529 = vmatpush1.msra.mxu0 0.0
    %1530 = vmatprep.subr.mxu0 0.0
    %1531 = vmatpush1.msra.mxu0 0.0
    %1532 = vmatprep.subr.mxu0 0.0
    %1533 = vmatpush1.msra.mxu0 0.0
    %1534 = vmatprep.subr.mxu0 0.0
    %1535 = vmatpush1.msra.mxu0 0.0
    %1536 = vmatprep.subr.mxu0 0.0
    %1537 = vmatpush1.msra.mxu0 0.0
    %1538 = vmatprep.subr.mxu0 0.0
    %1539 = vmatpush1.msra.mxu0 0.0
    %1540 = vmatprep.subr.mxu0 0.0
    %1541 = vmatpush1.msra.mxu0 0.0
    %1542 = vmatprep.subr.mxu0 0.0
    %1543 = vmatpush1.msra.mxu0 %v1514
    %1544 = vmatprep.subr.mxu0 0.0
    %1545 = vmatpush1.msra.mxu0 %v1513
    %1546 = vmatprep.subr.mxu0 0.0
    %1547 = vmatpush1.msra.mxu0 %v1512
    %1548 = vmatprep.subr.mxu0 0.0
    %1549 = vmatpush1.msra.mxu0 %v1511
    %1550 = vmatprep.subr.mxu0 0.0
    %1551 = vmatpush1.msra.mxu0 %v1510
    %1552 = vmatprep.subr.mxu0 0.0
    %1553 = vmatpush1.msra.mxu0 %v1509
    %1554 = vmatprep.subr.mxu0 0.0
    %1555 = vmatpush2.msra.mxu0 0.0
    %1556 = vmatprep.subr.mxu0 0.0
    %1557 = vmatpush2.msra.mxu0 0.0
    %1558 = vmatprep.subr.mxu0 0.0
    %1559 = vmatpush2.msra.mxu0 0.0
    %1560 = vmatprep.subr.mxu0 0.0
    %1561 = vmatpush2.msra.mxu0 0.0
    %1562 = vmatprep.subr.mxu0 0.0
    %1563 = vmatpush2.msra.mxu0 0.0
    %1564 = vmatprep.subr.mxu0 0.0
    %1565 = vmatpush2.msra.mxu0 0.0
    %1566 = vmatprep.subr.mxu0 0.0
    %1567 = vmatpush2.msra.mxu0 0.0
    %1568 = vmatprep.subr.mxu0 0.0
    %1569 = vmatpush2.msra.mxu0 0.0
    %1570 = vmatprep.subr.mxu0 0.0
    %1571 = vmatpush2.msra.mxu0 0.0
    %1572 = vmatprep.subr.mxu0 0.0
    %1573 = vmatpush2.msra.mxu0 0.0
    %1574 = vmatprep.subr.mxu0 0.0
    %1575 = vmatpush2.msra.mxu0 0.0
    %1576 = vmatprep.subr.mxu0 0.0
    %1577 = vmatpush2.msra.mxu0 0.0
    %1578 = vmatprep.subr.mxu0 0.0
    %1579 = vmatpush2.msra.mxu0 0.0
    %1580 = vmatprep.subr.mxu0 0.0
    %1581 = vmatpush2.msra.mxu0 0.0
    %1582 = vmatprep.subr.mxu0 0.0
    %1583 = vmatpush2.msra.mxu0 0.0
    %1584 = vmatprep.subr.mxu0 0.0
    %1585 = vmatpush2.msra.mxu0 0.0
    %1586 = vmatprep.mubr.f32.mxu0 0.0
    %1587 = vmatmul.mubr.f32.gmra.mxu0 %v1005
    %v1588 = vpop.f32.mrf.mxu0
    %v1589 = vadd.f32 %v1520, %v1588
    %v1590 = vpop.f32.mrf.mxu0
    %1591 = vmatprep.mubr.f32.mxu0 0.0
    %1592 = vmatmul.mubr.f32.gmra.mxu0 %v1008
    %v1593 = vpop.f32.mrf.mxu0
    %v1594 = vadd.f32 %v1520, %v1593
    %v1595 = vpop.f32.mrf.mxu0
    %1596 = vdwg.mxu0
    %v1597 = vadd.f32 %v42, %v1589
    %v1598 = vadd.f32 %v43, %v1594
    %vm1599 = vcmp.gt.f32.partialorder %v1597, 0.0
    %vm1600 = vcmp.gt.f32.partialorder %v1598, 0.0
    %v1601 = vmul.f32 %v1597, 1.442695
    %v1602 = vpow.pop %v1601
    %v1603 = vmul.f32 %v1598, 1.442695
    %v1604 = vpow.pop %v1603
    %v1605 = vsub.f32 %v1602, 1.0
    %v1606 = vsub.f32 %v1604, 1.0
    %v1607 = vsel %vm1599, %v1597, %v1605
    %v1608 = vsel %vm1600, %v1598, %v1606
    %1609 = vst.msk [vmem:[#allocation2] sm:$0xff] %vm220, %v1607
    %1610 = vst.msk [vmem:[#allocation2 + $0x8] sm:$0xff] %vm220, %v1608
    // Predicated region
    $region50: #{tpu_custom_call.1} parent=1 // pred_check
      _
    $region51: #{tpu_custom_call.1} parent=1 // pred_check_branch
      %1612 = sbr.rel (0) target = $region53
    $region52: #{tpu_custom_call.1} parent=1 // pred_region
      %s1614 = ssub.s32 256, 256
      %1615 = vsyncadd [#allocation3], %s1614
      %s1616 = sshll.u32 [#allocation2], 4
      %s1617 = int_to_ptr.vmem [resolvable:$true] %s1616
      %1622 = dma.vmem_to_hbm [thread:$0]  %s1617, 256, %s12, [#allocation3], 128, 128, 8
    $region53: #{tpu_custom_call.1} parent=1 // pred_fallthru
      _
    // Predicated region
    $region54: #{tpu_custom_call.1} parent=1 // pred_check
      _
    $region55: #{tpu_custom_call.1} parent=1 // pred_check_branch
      %1624 = sbr.rel (0) target = $region57
    $region56: #{tpu_custom_call.1} parent=1 // pred_region
      %1625 = dma.done [#allocation3], 256
    $region57: #{tpu_custom_call.1} parent=1 // pred_fallthru
      _
    %1626 = vsyncpa [#allocation3], 1

</llo_original>
